<compile_context>
chip_gen: v6e
topology: v6e:2x2x1
jax: 0.10.0
libtpu: 0.0.40
codegen_flags: <defaults>
</compile_context>

<pallas_src>
import functools

import jax
import jax.numpy as jnp
from jax.experimental import pallas as pl
from jax.experimental.pallas import tpu as pltpu

IN_FEATURES = 32 * 32 * 3   # 3072
H1 = 256
H2 = 256
OUT = 100
OUT_PAD = 128               # lane-dense padded output width (multiple of 128)

# 1024-row f32 x tiles: 2 x 12 MiB x-buffers + ~3.5 MiB weights + ~1 MiB out buffers
# stays well under v7x's 64 MiB VMEM while amortizing per-grid-step overhead.
DEFAULT_TILE_B = 1024


def _cdiv(a, b):
    return (a + b - 1) // b


def _round_up(n, m):
    return ((n + m - 1) // m) * m


def mlp_kernel(x_ref, w1_ref, b1_ref, w2_ref, b2_ref, w3_ref, b3_ref, o_ref):
    # Full MLP hot path in one kernel: 3 MXU matmuls (bf16 in, f32 accumulate)
    # + f32 VPU bias-add / ReLU epilogues.  x arrives as f32 and is cast here.
    x = x_ref[...].astype(jnp.bfloat16)                       # (TILE_B, 3072)
    h = jnp.dot(x, w1_ref[...], preferred_element_type=jnp.float32) + b1_ref[...]
    h = jnp.maximum(h, 0.0)                                   # ReLU in f32
    h = jnp.dot(h.astype(jnp.bfloat16), w2_ref[...],
                preferred_element_type=jnp.float32) + b2_ref[...]
    h = jnp.maximum(h, 0.0)                                   # ReLU in f32
    o = jnp.dot(h.astype(jnp.bfloat16), w3_ref[...],
                preferred_element_type=jnp.float32) + b3_ref[...]
    o_ref[...] = o.astype(o_ref.dtype)                        # (TILE_B, 128) f32


def prepare_params(params):
    """One-time weight prep (bf16 cast + fc3 lane padding), done OUTSIDE the
    jitted forward so it never shows up on the per-call latency path."""
    w1, b1, w2, b2, w3, b3 = params
    w1b = w1.astype(jnp.bfloat16)
    w2b = w2.astype(jnp.bfloat16)
    w3b = jnp.pad(w3, ((0, 0), (0, OUT_PAD - OUT))).astype(jnp.bfloat16)
    b1f = b1.reshape(1, H1).astype(jnp.float32)
    b2f = b2.reshape(1, H2).astype(jnp.float32)
    b3f = jnp.pad(b3.reshape(1, OUT), ((0, 0), (0, OUT_PAD - OUT))).astype(jnp.float32)
    return (w1b, b1f, w2b, b2f, w3b, b3f)


@functools.partial(jax.jit, static_argnames=("tile_b",))
def basic_forward(x, prepared_params, *, tile_b=DEFAULT_TILE_B):
    """x: [B, 3, 32, 32] float32 (NCHW). Returns [B, 100] float32."""
    w1b, b1f, w2b, b2f, w3b, b3f = prepared_params
    B = x.shape[0]
    x_flat = x.reshape(B, -1).astype(jnp.float32)   # == torch .view(B, -1) on NCHW

    # Batch tile: 8-aligned, <= tile_b, and capped at ceil(B/2) so the grid has
    # >= 2 steps whenever B > 8 (lets v7x shard tiles across its 2 TensorCores).
    tb = min(tile_b, _round_up(_cdiv(B, 2), 8))
    tb = max(tb, 8)
    grid = (_cdiv(B, tb),)                          # ragged last block masked by Pallas

    rows = grid[0] * tb
    flops = 2 * rows * (IN_FEATURES * H1 + H1 * H2 + H2 * OUT_PAD)
    bytes_accessed = (
        B * IN_FEATURES * 4                                      # x stream (f32)
        + (IN_FEATURES * H1 + H1 * H2 + H2 * OUT_PAD) * 2        # weights (bf16)
        + (H1 + H2 + OUT_PAD) * 4                                # biases (f32)
        + B * OUT_PAD * 4                                        # output (f32)
    )

    out = pl.pallas_call(
        mlp_kernel,
        out_shape=jax.ShapeDtypeStruct((B, OUT_PAD), jnp.float32),
        grid=grid,
        in_specs=[
            pl.BlockSpec((tb, IN_FEATURES), lambda i: (i, 0)),       # x: streamed f32
            pl.BlockSpec((IN_FEATURES, H1), lambda i: (0, 0)),       # w1: resident
            pl.BlockSpec((1, H1), lambda i: (0, 0)),                 # b1
            pl.BlockSpec((H1, H2), lambda i: (0, 0)),                # w2
            pl.BlockSpec((1, H2), lambda i: (0, 0)),                 # b2
            pl.BlockSpec((H2, OUT_PAD), lambda i: (0, 0)),           # w3 (padded)
            pl.BlockSpec((1, OUT_PAD), lambda i: (0, 0)),            # b3 (padded)
        ],
        out_specs=pl.BlockSpec((tb, OUT_PAD), lambda i: (i, 0)),
        compiler_params=pltpu.CompilerParams(
            dimension_semantics=("parallel",),      # shard batch tiles across TCs (v7x)
            vmem_limit_bytes=40 << 20,              # fits tb=1024 f32 tiles on v7x (64 MiB)
        ),
        cost_estimate=pl.CostEstimate(
            flops=flops, transcendentals=0, bytes_accessed=bytes_accessed),
    )(x_flat, w1b, b1f, w2b, b2f, w3b, b3f)

    return out[:, :OUT]


def init_params(key):
    """Deterministic nn.Linear-style init: U(-1/sqrt(fan_in), 1/sqrt(fan_in)).
    Weights stored as (in_features, out_features) so forward is x @ W + b."""
    def linear(key, fan_in, fan_out):
        kw, kb = jax.random.split(key)
        bound = 1.0 / jnp.sqrt(fan_in)
        w = jax.random.uniform(kw, (fan_in, fan_out), jnp.float32, -bound, bound)
        b = jax.random.uniform(kb, (1, fan_out), jnp.float32, -bound, bound)
        return w, b

    k1, k2, k3 = jax.random.split(key, 3)
    w1, b1 = linear(k1, IN_FEATURES, H1)
    w2, b2 = linear(k2, H1, H2)
    w3, b3 = linear(k3, H2, OUT)
    return (w1, b1, w2, b2, w3, b3)


if __name__ == "__main__":
    key = jax.random.PRNGKey(0)
    kx, kp = jax.random.split(key)

    B = 2
    x = jax.random.normal(kx, (B, 3, 32, 32), jnp.float32)  # CIFAR-like NCHW input
    params = init_params(kp)
    prepared = jax.tree_util.tree_map(jax.block_until_ready, prepare_params(params))

    out = basic_forward(x, prepared)
    out = jax.block_until_ready(out)
    assert out.shape == (B, OUT)

    w1, b1, w2, b2, w3, b3 = params

    # Reference 1: same bf16-compute / f32-accumulate semantics in pure JAX (tight check).
    hb = x.reshape(B, -1).astype(jnp.bfloat16)
    hb = jnp.maximum(
        jnp.dot(hb, w1.astype(jnp.bfloat16), preferred_element_type=jnp.float32) + b1, 0.0)
    hb = jnp.maximum(
        jnp.dot(hb.astype(jnp.bfloat16), w2.astype(jnp.bfloat16),
                preferred_element_type=jnp.float32) + b2, 0.0)
    ref_bf16 = jnp.dot(hb.astype(jnp.bfloat16), w3.astype(jnp.bfloat16),
                       preferred_element_type=jnp.float32) + b3
    assert jnp.allclose(out, ref_bf16, atol=1e-2, rtol=1e-2)

    # Reference 2: full-f32 PyTorch semantics (loose check for bf16 rounding).
    hf = x.reshape(B, -1)
    hf = jnp.maximum(hf @ w1 + b1, 0.0)
    hf = jnp.maximum(hf @ w2 + b2, 0.0)
    ref_f32 = hf @ w3 + b3
    assert jnp.allclose(out, ref_f32, atol=1e-1, rtol=1e-1)

    print("KERNEL_OK")
</pallas_src>

<mosaic_0001>
module attributes {stable_mosaic.version = 11 : i64} {
  func.func @mlp_kernel(%arg0: i32, %arg1: memref<8x3072xf32, #tpu.memory_space<vmem>>, %arg2: memref<3072x256xbf16, #tpu.memory_space<vmem>>, %arg3: memref<1x256xf32, #tpu.memory_space<vmem>>, %arg4: memref<256x256xbf16, #tpu.memory_space<vmem>>, %arg5: memref<1x256xf32, #tpu.memory_space<vmem>>, %arg6: memref<256x128xbf16, #tpu.memory_space<vmem>>, %arg7: memref<1x128xf32, #tpu.memory_space<vmem>>, %arg8: memref<8x128xf32, #tpu.memory_space<vmem>>) attributes {dimension_semantics = [#tpu.dimension_semantics<parallel>], iteration_bounds = array<i64: 1>, scalar_prefetch = 0 : i64, scratch_operands = 0 : i64, tpu.core_type = #tpu.core_type<tc>, window_params = [{transform_indices = @transform_0, window_bounds = array<i64: 8, 3072>}, {pipeline_mode = #tpu.pipeline_mode<synchronous>, transform_indices = @transform_1, window_bounds = array<i64: 3072, 256>}, {pipeline_mode = #tpu.pipeline_mode<synchronous>, transform_indices = @transform_2, window_bounds = array<i64: 1, 256>}, {pipeline_mode = #tpu.pipeline_mode<synchronous>, transform_indices = @transform_3, window_bounds = array<i64: 256, 256>}, {pipeline_mode = #tpu.pipeline_mode<synchronous>, transform_indices = @transform_4, window_bounds = array<i64: 1, 256>}, {pipeline_mode = #tpu.pipeline_mode<synchronous>, transform_indices = @transform_5, window_bounds = array<i64: 256, 128>}, {pipeline_mode = #tpu.pipeline_mode<synchronous>, transform_indices = @transform_6, window_bounds = array<i64: 1, 128>}, {transform_indices = @transform_7, window_bounds = array<i64: 8, 128>}]} {
    %c0 = arith.constant 0 : index
    %c0_0 = arith.constant 0 : index
    %0 = vector.load %arg1[%c0, %c0_0] : memref<8x3072xf32, #tpu.memory_space<vmem>>, vector<8x3072xf32>
    %1 = arith.truncf %0 : vector<8x3072xf32> to vector<8x3072xbf16>
    %c0_1 = arith.constant 0 : index
    %c0_2 = arith.constant 0 : index
    %2 = vector.load %arg2[%c0_1, %c0_2] : memref<3072x256xbf16, #tpu.memory_space<vmem>>, vector<3072x256xbf16>
    %cst = arith.constant dense<0.000000e+00> : vector<8x256xf32>
    %3 = tpu.matmul %1, %2, %cst {dimension_numbers = #tpu.dot_dimension_numbers<[1], [0], [0], [1], [0, 0, 1, 1], [], []>} : vector<8x3072xbf16>, vector<3072x256xbf16>, vector<8x256xf32> -> vector<8x256xf32>
    %c0_3 = arith.constant 0 : index
    %c0_4 = arith.constant 0 : index
    %4 = vector.load %arg3[%c0_3, %c0_4] : memref<1x256xf32, #tpu.memory_space<vmem>>, vector<1x256xf32>
    %5 = vector.broadcast %4 : vector<1x256xf32> to vector<8x256xf32>
    %6 = arith.addf %3, %5 : vector<8x256xf32>
    %cst_5 = arith.constant 0.000000e+00 : f32
    %7 = vector.broadcast %cst_5 : f32 to vector<8x256xf32>
    %8 = arith.maximumf %6, %7 : vector<8x256xf32>
    %9 = arith.truncf %8 : vector<8x256xf32> to vector<8x256xbf16>
    %c0_6 = arith.constant 0 : index
    %c0_7 = arith.constant 0 : index
    %10 = vector.load %arg4[%c0_6, %c0_7] : memref<256x256xbf16, #tpu.memory_space<vmem>>, vector<256x256xbf16>
    %cst_8 = arith.constant dense<0.000000e+00> : vector<8x256xf32>
    %11 = tpu.matmul %9, %10, %cst_8 {dimension_numbers = #tpu.dot_dimension_numbers<[1], [0], [0], [1], [0, 0, 1, 1], [], []>} : vector<8x256xbf16>, vector<256x256xbf16>, vector<8x256xf32> -> vector<8x256xf32>
    %c0_9 = arith.constant 0 : index
    %c0_10 = arith.constant 0 : index
    %12 = vector.load %arg5[%c0_9, %c0_10] : memref<1x256xf32, #tpu.memory_space<vmem>>, vector<1x256xf32>
    %13 = vector.broadcast %12 : vector<1x256xf32> to vector<8x256xf32>
    %14 = arith.addf %11, %13 : vector<8x256xf32>
    %cst_11 = arith.constant 0.000000e+00 : f32
    %15 = vector.broadcast %cst_11 : f32 to vector<8x256xf32>
    %16 = arith.maximumf %14, %15 : vector<8x256xf32>
    %17 = arith.truncf %16 : vector<8x256xf32> to vector<8x256xbf16>
    %c0_12 = arith.constant 0 : index
    %c0_13 = arith.constant 0 : index
    %18 = vector.load %arg6[%c0_12, %c0_13] : memref<256x128xbf16, #tpu.memory_space<vmem>>, vector<256x128xbf16>
    %cst_14 = arith.constant dense<0.000000e+00> : vector<8x128xf32>
    %19 = tpu.matmul %17, %18, %cst_14 {dimension_numbers = #tpu.dot_dimension_numbers<[1], [0], [0], [1], [0, 0, 1, 1], [], []>} : vector<8x256xbf16>, vector<256x128xbf16>, vector<8x128xf32> -> vector<8x128xf32>
    %c0_15 = arith.constant 0 : index
    %c0_16 = arith.constant 0 : index
    %20 = vector.load %arg7[%c0_15, %c0_16] : memref<1x128xf32, #tpu.memory_space<vmem>>, vector<1x128xf32>
    %21 = vector.broadcast %20 : vector<1x128xf32> to vector<8x128xf32>
    %22 = arith.addf %19, %21 : vector<8x128xf32>
    %c0_17 = arith.constant 0 : index
    %c0_18 = arith.constant 0 : index
    %23 = vector.load %arg8[%c0_17, %c0_18] : memref<8x128xf32, #tpu.memory_space<vmem>>, vector<8x128xf32>
    tpu.vector_store %arg8[%c0_17, %c0_18], %22 {strides = array<i32>} : memref<8x128xf32, #tpu.memory_space<vmem>>, vector<8x128xf32>,
    return
  }
  func.func @transform_0(%arg0: i32) -> (i32, i32) {
    %c0_i32 = arith.constant 0 : i32
    %c0_i32_0 = arith.constant 0 : i32
    return %arg0, %c0_i32 : i32, i32
  }
  func.func @transform_1(%arg0: i32) -> (i32, i32) {
    %c0_i32 = arith.constant 0 : i32
    %c0_i32_0 = arith.constant 0 : i32
    %c0_i32_1 = arith.constant 0 : i32
    return %c0_i32, %c0_i32_0 : i32, i32
  }
  func.func @transform_2(%arg0: i32) -> (i32, i32) {
    %c0_i32 = arith.constant 0 : i32
    %c0_i32_0 = arith.constant 0 : i32
    %c0_i32_1 = arith.constant 0 : i32
    return %c0_i32, %c0_i32_0 : i32, i32
  }
  func.func @transform_3(%arg0: i32) -> (i32, i32) {
    %c0_i32 = arith.constant 0 : i32
    %c0_i32_0 = arith.constant 0 : i32
    %c0_i32_1 = arith.constant 0 : i32
    return %c0_i32, %c0_i32_0 : i32, i32
  }
  func.func @transform_4(%arg0: i32) -> (i32, i32) {
    %c0_i32 = arith.constant 0 : i32
    %c0_i32_0 = arith.constant 0 : i32
    %c0_i32_1 = arith.constant 0 : i32
    return %c0_i32, %c0_i32_0 : i32, i32
  }
  func.func @transform_5(%arg0: i32) -> (i32, i32) {
    %c0_i32 = arith.constant 0 : i32
    %c0_i32_0 = arith.constant 0 : i32
    %c0_i32_1 = arith.constant 0 : i32
    return %c0_i32, %c0_i32_0 : i32, i32
  }
  func.func @transform_6(%arg0: i32) -> (i32, i32) {
    %c0_i32 = arith.constant 0 : i32
    %c0_i32_0 = arith.constant 0 : i32
    %c0_i32_1 = arith.constant 0 : i32
    return %c0_i32, %c0_i32_0 : i32, i32
  }
  func.func @transform_7(%arg0: i32) -> (i32, i32) {
    %c0_i32 = arith.constant 0 : i32
    %c0_i32_0 = arith.constant 0 : i32
    return %arg0, %c0_i32 : i32, i32
  }
}

</mosaic_0001>

<llo_original>
// kernel: basic_forward.1
$region0: #{basic_forward.1}
  #allocation0 [shape = 'u32[]', space=smem, size = 0x4, offset = 0x4, fixed_abs, tag = 'smem constant byte address 0x4 - core index']
  #allocation1 [shape = 'u32[144,128]{1,0:T(1,128)}', space=vmem, size = 0x12000, scoped, tag = 'internal scratch']
  %s0 = inlined_call_operand.vmem [shape: f32[2,3072], index: 0, kind: input, shape index: {}]
  %s1 = inlined_call_operand.hbm [shape: bf16[3072,256], index: 1, kind: input, shape index: {}]
  %s2 = inlined_call_operand.hbm [shape: f32[1,256], index: 2, kind: input, shape index: {}]
  %s3 = inlined_call_operand.hbm [shape: bf16[256,256], index: 3, kind: input, shape index: {}]
  %s4 = inlined_call_operand.hbm [shape: f32[1,256], index: 4, kind: input, shape index: {}]
  %s5 = inlined_call_operand.hbm [shape: bf16[256,128], index: 5, kind: input, shape index: {}]
  %s6 = inlined_call_operand.hbm [shape: f32[1,128], index: 6, kind: input, shape index: {}]
  %s7 = inlined_call_operand.hbm [shape: f32[2,128], index: 7, kind: output, shape index: {}]
  %s8 = sld [smem:[#allocation0]]
  $region62: #{basic_forward.1} parent=0
    _
  %s10 = ssub.s32 1, %s8
  %s11 = scalar_select 0, %s10, %s8
  $region1: #{basic_forward.1} parent=0
    #allocation2 [shape = 'u8[1572864]{0}', space=vmem, size = 0x180000, scoped, tag = 'input window, operand 1, single buffered']
    #allocation3 [shape = 's32[1]{0}', space=sflag, size = 0x4, scoped, tag = 'scoped memory for basic_forward.1']
    #allocation4 [shape = 's32[1]{0}', space=sflag, size = 0x4, scoped, tag = 'scoped memory for basic_forward.1']
    #allocation5 [shape = 'u8[1024]{0}', space=vmem, size = 0x400, scoped, tag = 'input window, operand 2, single buffered']
    #allocation6 [shape = 's32[1]{0}', space=sflag, size = 0x4, scoped, tag = 'scoped memory for basic_forward.1']
    #allocation7 [shape = 'u8[131072]{0}', space=vmem, size = 0x20000, scoped, tag = 'input window, operand 3, single buffered']
    #allocation8 [shape = 'u8[1024]{0}', space=vmem, size = 0x400, scoped, tag = 'input window, operand 4, single buffered']
    #allocation9 [shape = 's32[1]{0}', space=sflag, size = 0x4, scoped, tag = 'scoped memory for basic_forward.1']
    #allocation10 [shape = 'u8[65536]{0}', space=vmem, size = 0x10000, scoped, tag = 'input window, operand 5, single buffered']
    #allocation11 [shape = 'u8[512]{0}', space=vmem, size = 0x400, scoped, tag = 'input window, operand 6, single buffered']
    #allocation12 [shape = 's32[1]{0}', space=sflag, size = 0x4, scoped, tag = 'scoped memory for basic_forward.1']
    #allocation13 [shape = 'u8[4096]{0}', space=vmem, size = 0x1000, scoped, tag = 'output window, operand 0, single buffered']
    %12 = vsyncpa [#allocation3], 0
    %13 = vsyncpa [#allocation6], 0
    %14 = vsyncpa [#allocation9], 0
    %15 = vsyncpa [#allocation12], 0
    %16 = vsyncpa [#allocation4], 0
    // Predicated region
    $region2: #{basic_forward.1} parent=1 // pred_check
      _
    $region3: #{basic_forward.1} parent=1 // pred_check_branch
      %18 = sbr.rel (0) target = $region5
    $region4: #{basic_forward.1} parent=1 // pred_region
      _
    $region5: #{basic_forward.1} parent=1 // pred_fallthru
      _
    // Predicated region
    $region6: #{basic_forward.1} parent=1 // pred_check
      _
    $region7: #{basic_forward.1} parent=1 // pred_check_branch
      %20 = sbr.rel (0) target = $region9
    $region8: #{basic_forward.1} parent=1 // pred_region
      %s22 = ssub.s32 49152, 49152
      %23 = vsyncadd [#allocation3], %s22
      %s24 = sshll.u32 [#allocation2], 4
      %s25 = int_to_ptr.vmem [resolvable:$true] %s24
      %30 = dma.hbm_to_vmem [thread:$0]  %s1, 49152, %s25, [#allocation3], 128, 128, 8
    $region9: #{basic_forward.1} parent=1 // pred_fallthru
      _
    // Predicated region
    $region10: #{basic_forward.1} parent=1 // pred_check
      _
    $region11: #{basic_forward.1} parent=1 // pred_check_branch
      %32 = sbr.rel (0) target = $region13
    $region12: #{basic_forward.1} parent=1 // pred_region
      %s34 = ssub.s32 32, 32
      %35 = vsyncadd [#allocation6], %s34
      %s37 = sshll.u32 [#allocation5], 4
      %s38 = int_to_ptr.vmem [resolvable:$true] %s37
      %40 = dma.hbm_to_vmem [thread:$0]  %s2, 32, %s38, [#allocation6]
    $region13: #{basic_forward.1} parent=1 // pred_fallthru
      _
    // Predicated region
    $region14: #{basic_forward.1} parent=1 // pred_check
      _
    $region15: #{basic_forward.1} parent=1 // pred_check_branch
      %42 = sbr.rel (0) target = $region17
    $region16: #{basic_forward.1} parent=1 // pred_region
      %s44 = ssub.s32 4096, 4096
      %45 = vsyncadd [#allocation6], %s44
      %s46 = sshll.u32 [#allocation7], 4
      %s47 = int_to_ptr.vmem [resolvable:$true] %s46
      %52 = dma.hbm_to_vmem [thread:$0]  %s3, 4096, %s47, [#allocation6], 128, 128, 8
    $region17: #{basic_forward.1} parent=1 // pred_fallthru
      _
    // Predicated region
    $region18: #{basic_forward.1} parent=1 // pred_check
      _
    $region19: #{basic_forward.1} parent=1 // pred_check_branch
      %54 = sbr.rel (0) target = $region21
    $region20: #{basic_forward.1} parent=1 // pred_region
      %s56 = ssub.s32 32, 32
      %57 = vsyncadd [#allocation9], %s56
      %s59 = sshll.u32 [#allocation8], 4
      %s60 = int_to_ptr.vmem [resolvable:$true] %s59
      %62 = dma.hbm_to_vmem [thread:$0]  %s4, 32, %s60, [#allocation9]
    $region21: #{basic_forward.1} parent=1 // pred_fallthru
      _
    // Predicated region
    $region22: #{basic_forward.1} parent=1 // pred_check
      _
    $region23: #{basic_forward.1} parent=1 // pred_check_branch
      %64 = sbr.rel (0) target = $region25
    $region24: #{basic_forward.1} parent=1 // pred_region
      %s66 = ssub.s32 2048, 2048
      %67 = vsyncadd [#allocation9], %s66
      %s68 = sshll.u32 [#allocation10], 4
      %s69 = int_to_ptr.vmem [resolvable:$true] %s68
      %74 = dma.hbm_to_vmem [thread:$0]  %s5, 2048, %s69, [#allocation9], 64, 64, 4
    $region25: #{basic_forward.1} parent=1 // pred_fallthru
      _
    // Predicated region
    $region26: #{basic_forward.1} parent=1 // pred_check
      _
    $region27: #{basic_forward.1} parent=1 // pred_check_branch
      %76 = sbr.rel (0) target = $region29
    $region28: #{basic_forward.1} parent=1 // pred_region
      %s78 = ssub.s32 16, 16
      %79 = vsyncadd [#allocation12], %s78
      %s81 = sshll.u32 [#allocation11], 4
      %s82 = int_to_ptr.vmem [resolvable:$true] %s81
      %84 = dma.hbm_to_vmem [thread:$0]  %s6, 16, %s82, [#allocation12]
    $region29: #{basic_forward.1} parent=1 // pred_fallthru
      _
    // Predicated region
    $region30: #{basic_forward.1} parent=1 // pred_check
      _
    $region31: #{basic_forward.1} parent=1 // pred_check_branch
      %86 = sbr.rel (0) target = $region33
    $region32: #{basic_forward.1} parent=1 // pred_region
      %87 = dma.done [#allocation3], 49152
    $region33: #{basic_forward.1} parent=1 // pred_fallthru
      _
    // Predicated region
    $region34: #{basic_forward.1} parent=1 // pred_check
      _
    $region35: #{basic_forward.1} parent=1 // pred_check_branch
      %89 = sbr.rel (0) target = $region37
    $region36: #{basic_forward.1} parent=1 // pred_region
      %90 = dma.done [#allocation6], 32
    $region37: #{basic_forward.1} parent=1 // pred_fallthru
      _
    // Predicated region
    $region38: #{basic_forward.1} parent=1 // pred_check
      _
    $region39: #{basic_forward.1} parent=1 // pred_check_branch
      %92 = sbr.rel (0) target = $region41
    $region40: #{basic_forward.1} parent=1 // pred_region
      %93 = dma.done [#allocation6], 4096
    $region41: #{basic_forward.1} parent=1 // pred_fallthru
      _
    // Predicated region
    $region42: #{basic_forward.1} parent=1 // pred_check
      _
    $region43: #{basic_forward.1} parent=1 // pred_check_branch
      %95 = sbr.rel (0) target = $region45
    $region44: #{basic_forward.1} parent=1 // pred_region
      %96 = dma.done [#allocation9], 32
    $region45: #{basic_forward.1} parent=1 // pred_fallthru
      _
    // Predicated region
    $region46: #{basic_forward.1} parent=1 // pred_check
      _
    $region47: #{basic_forward.1} parent=1 // pred_check_branch
      %98 = sbr.rel (0) target = $region49
    $region48: #{basic_forward.1} parent=1 // pred_region
      %99 = dma.done [#allocation9], 2048
    $region49: #{basic_forward.1} parent=1 // pred_fallthru
      _
    // Predicated region
    $region50: #{basic_forward.1} parent=1 // pred_check
      _
    $region51: #{basic_forward.1} parent=1 // pred_check_branch
      %101 = sbr.rel (0) target = $region53
    $region52: #{basic_forward.1} parent=1 // pred_region
      %102 = dma.done [#allocation12], 16
    $region53: #{basic_forward.1} parent=1 // pred_fallthru
      _
    %v104 = vld [vmem:[%s0] sm:$0xff]
    %v105 = vld [vmem:[%s0 + $0x8] sm:$0xff]
    %v106 = vld [vmem:[%s0 + $0x10] sm:$0xff]
    %v107 = vld [vmem:[%s0 + $0x18] sm:$0xff]
    %v108 = vld [vmem:[%s0 + $0x20] sm:$0xff]
    %v109 = vld [vmem:[%s0 + $0x28] sm:$0xff]
    %v110 = vld [vmem:[%s0 + $0x30] sm:$0xff]
    %v111 = vld [vmem:[%s0 + $0x38] sm:$0xff]
    %v112 = vld [vmem:[%s0 + $0x40] sm:$0xff]
    %v113 = vld [vmem:[%s0 + $0x48] sm:$0xff]
    %v114 = vld [vmem:[%s0 + $0x50] sm:$0xff]
    %v115 = vld [vmem:[%s0 + $0x58] sm:$0xff]
    %v116 = vld [vmem:[%s0 + $0x60] sm:$0xff]
    %v117 = vld [vmem:[%s0 + $0x68] sm:$0xff]
    %v118 = vld [vmem:[%s0 + $0x70] sm:$0xff]
    %v119 = vld [vmem:[%s0 + $0x78] sm:$0xff]
    %v120 = vld [vmem:[%s0 + $0x80] sm:$0xff]
    %v121 = vld [vmem:[%s0 + $0x88] sm:$0xff]
    %v122 = vld [vmem:[%s0 + $0x90] sm:$0xff]
    %v123 = vld [vmem:[%s0 + $0x98] sm:$0xff]
    %v124 = vld [vmem:[%s0 + $0xa0] sm:$0xff]
    %v125 = vld [vmem:[%s0 + $0xa8] sm:$0xff]
    %v126 = vld [vmem:[%s0 + $0xb0] sm:$0xff]
    %v127 = vld [vmem:[%s0 + $0xb8] sm:$0xff]
    %v152 = vcombine.low %v104, %v110
    %v153 = vcombine.high %v104, %v110
    %v154 = vcombine.low %v116, %v122
    %v155 = vcombine.high %v116, %v122
    %v157 = vunpack.c.l.s4 1983009808
    %v158 = vunpack.c.0.s8 %v157
    %v159 = vlaneseq
    %v160 = vshrl.u32 %v159, 7
    %v161 = vsub.s32 %v158, %v160
    %v162 = vrot.slane %v152, %v161
    %v164 = vunpack.c.l.s4 1983009808
    %v165 = vunpack.c.0.s8 %v164
    %v166 = vlaneseq
    %v167 = vshrl.u32 %v166, 7
    %v168 = vsub.s32 %v165, %v167
    %v169 = vrot.slane %v153, %v168
    %v171 = vunpack.c.l.s4 1983009808
    %v172 = vunpack.c.0.s8 %v171
    %v173 = vlaneseq
    %v174 = vshrl.u32 %v173, 7
    %v175 = vsub.s32 %v172, %v174
    %v176 = vrot.slane %v154, %v175
    %v178 = vunpack.c.l.s4 1983009808
    %v179 = vunpack.c.0.s8 %v178
    %v180 = vlaneseq
    %v181 = vshrl.u32 %v180, 7
    %v182 = vsub.s32 %v179, %v181
    %v183 = vrot.slane %v155, %v182
    %v184 = vcombine.low %v162, %v176
    %v185 = vcombine.high %v162, %v176
    %v186 = vcombine.low %v169, %v183
    %v187 = vcombine.high %v169, %v183
    %v188 = vcombine.low %v105, %v111
    %v189 = vcombine.high %v105, %v111
    %v190 = vcombine.low %v117, %v123
    %v191 = vcombine.high %v117, %v123
    %v193 = vunpack.c.l.s4 1983009808
    %v194 = vunpack.c.0.s8 %v193
    %v195 = vlaneseq
    %v196 = vshrl.u32 %v195, 7
    %v197 = vsub.s32 %v194, %v196
    %v198 = vrot.slane %v188, %v197
    %v200 = vunpack.c.l.s4 1983009808
    %v201 = vunpack.c.0.s8 %v200
    %v202 = vlaneseq
    %v203 = vshrl.u32 %v202, 7
    %v204 = vsub.s32 %v201, %v203
    %v205 = vrot.slane %v189, %v204
    %v207 = vunpack.c.l.s4 1983009808
    %v208 = vunpack.c.0.s8 %v207
    %v209 = vlaneseq
    %v210 = vshrl.u32 %v209, 7
    %v211 = vsub.s32 %v208, %v210
    %v212 = vrot.slane %v190, %v211
    %v214 = vunpack.c.l.s4 1983009808
    %v215 = vunpack.c.0.s8 %v214
    %v216 = vlaneseq
    %v217 = vshrl.u32 %v216, 7
    %v218 = vsub.s32 %v215, %v217
    %v219 = vrot.slane %v191, %v218
    %v220 = vcombine.low %v198, %v212
    %v221 = vcombine.high %v198, %v212
    %v222 = vcombine.low %v205, %v219
    %v223 = vcombine.high %v205, %v219
    %v224 = vcombine.low %v106, %v112
    %v225 = vcombine.high %v106, %v112
    %v226 = vcombine.low %v118, %v124
    %v227 = vcombine.high %v118, %v124
    %v229 = vunpack.c.l.s4 1983009808
    %v230 = vunpack.c.0.s8 %v229
    %v231 = vlaneseq
    %v232 = vshrl.u32 %v231, 7
    %v233 = vsub.s32 %v230, %v232
    %v234 = vrot.slane %v224, %v233
    %v236 = vunpack.c.l.s4 1983009808
    %v237 = vunpack.c.0.s8 %v236
    %v238 = vlaneseq
    %v239 = vshrl.u32 %v238, 7
    %v240 = vsub.s32 %v237, %v239
    %v241 = vrot.slane %v225, %v240
    %v243 = vunpack.c.l.s4 1983009808
    %v244 = vunpack.c.0.s8 %v243
    %v245 = vlaneseq
    %v246 = vshrl.u32 %v245, 7
    %v247 = vsub.s32 %v244, %v246
    %v248 = vrot.slane %v226, %v247
    %v250 = vunpack.c.l.s4 1983009808
    %v251 = vunpack.c.0.s8 %v250
    %v252 = vlaneseq
    %v253 = vshrl.u32 %v252, 7
    %v254 = vsub.s32 %v251, %v253
    %v255 = vrot.slane %v227, %v254
    %v256 = vcombine.low %v234, %v248
    %v257 = vcombine.high %v234, %v248
    %v258 = vcombine.low %v241, %v255
    %v259 = vcombine.high %v241, %v255
    %v260 = vcombine.low %v107, %v113
    %v261 = vcombine.high %v107, %v113
    %v262 = vcombine.low %v119, %v125
    %v263 = vcombine.high %v119, %v125
    %v265 = vunpack.c.l.s4 1983009808
    %v266 = vunpack.c.0.s8 %v265
    %v267 = vlaneseq
    %v268 = vshrl.u32 %v267, 7
    %v269 = vsub.s32 %v266, %v268
    %v270 = vrot.slane %v260, %v269
    %v272 = vunpack.c.l.s4 1983009808
    %v273 = vunpack.c.0.s8 %v272
    %v274 = vlaneseq
    %v275 = vshrl.u32 %v274, 7
    %v276 = vsub.s32 %v273, %v275
    %v277 = vrot.slane %v261, %v276
    %v279 = vunpack.c.l.s4 1983009808
    %v280 = vunpack.c.0.s8 %v279
    %v281 = vlaneseq
    %v282 = vshrl.u32 %v281, 7
    %v283 = vsub.s32 %v280, %v282
    %v284 = vrot.slane %v262, %v283
    %v286 = vunpack.c.l.s4 1983009808
    %v287 = vunpack.c.0.s8 %v286
    %v288 = vlaneseq
    %v289 = vshrl.u32 %v288, 7
    %v290 = vsub.s32 %v287, %v289
    %v291 = vrot.slane %v263, %v290
    %v292 = vcombine.low %v270, %v284
    %v293 = vcombine.high %v270, %v284
    %v294 = vcombine.low %v277, %v291
    %v295 = vcombine.high %v277, %v291
    %v296 = vcombine.low %v108, %v114
    %v297 = vcombine.high %v108, %v114
    %v298 = vcombine.low %v120, %v126
    %v299 = vcombine.high %v120, %v126
    %v301 = vunpack.c.l.s4 1983009808
    %v302 = vunpack.c.0.s8 %v301
    %v303 = vlaneseq
    %v304 = vshrl.u32 %v303, 7
    %v305 = vsub.s32 %v302, %v304
    %v306 = vrot.slane %v296, %v305
    %v308 = vunpack.c.l.s4 1983009808
    %v309 = vunpack.c.0.s8 %v308
    %v310 = vlaneseq
    %v311 = vshrl.u32 %v310, 7
    %v312 = vsub.s32 %v309, %v311
    %v313 = vrot.slane %v297, %v312
    %v315 = vunpack.c.l.s4 1983009808
    %v316 = vunpack.c.0.s8 %v315
    %v317 = vlaneseq
    %v318 = vshrl.u32 %v317, 7
    %v319 = vsub.s32 %v316, %v318
    %v320 = vrot.slane %v298, %v319
    %v322 = vunpack.c.l.s4 1983009808
    %v323 = vunpack.c.0.s8 %v322
    %v324 = vlaneseq
    %v325 = vshrl.u32 %v324, 7
    %v326 = vsub.s32 %v323, %v325
    %v327 = vrot.slane %v299, %v326
    %v328 = vcombine.low %v306, %v320
    %v329 = vcombine.high %v306, %v320
    %v330 = vcombine.low %v313, %v327
    %v331 = vcombine.high %v313, %v327
    %v332 = vcombine.low %v109, %v115
    %v333 = vcombine.high %v109, %v115
    %v334 = vcombine.low %v121, %v127
    %v335 = vcombine.high %v121, %v127
    %v337 = vunpack.c.l.s4 1983009808
    %v338 = vunpack.c.0.s8 %v337
    %v339 = vlaneseq
    %v340 = vshrl.u32 %v339, 7
    %v341 = vsub.s32 %v338, %v340
    %v342 = vrot.slane %v332, %v341
    %v344 = vunpack.c.l.s4 1983009808
    %v345 = vunpack.c.0.s8 %v344
    %v346 = vlaneseq
    %v347 = vshrl.u32 %v346, 7
    %v348 = vsub.s32 %v345, %v347
    %v349 = vrot.slane %v333, %v348
    %v351 = vunpack.c.l.s4 1983009808
    %v352 = vunpack.c.0.s8 %v351
    %v353 = vlaneseq
    %v354 = vshrl.u32 %v353, 7
    %v355 = vsub.s32 %v352, %v354
    %v356 = vrot.slane %v334, %v355
    %v358 = vunpack.c.l.s4 1983009808
    %v359 = vunpack.c.0.s8 %v358
    %v360 = vlaneseq
    %v361 = vshrl.u32 %v360, 7
    %v362 = vsub.s32 %v359, %v361
    %v363 = vrot.slane %v335, %v362
    %v364 = vcombine.low %v342, %v356
    %v365 = vcombine.high %v342, %v356
    %v366 = vcombine.low %v349, %v363
    %v367 = vcombine.high %v349, %v363
    %v392 = vpack.c.bf16 %v184, %v184
    %v393 = vpack.c.bf16 %v185, %v185
    %v394 = vpack.c.bf16 %v186, %v186
    %v395 = vpack.c.bf16 %v187, %v187
    %v396 = vpack.c.bf16 %v220, %v220
    %v397 = vpack.c.bf16 %v221, %v221
    %v398 = vpack.c.bf16 %v222, %v222
    %v399 = vpack.c.bf16 %v223, %v223
    %v400 = vpack.c.bf16 %v256, %v256
    %v401 = vpack.c.bf16 %v257, %v257
    %v402 = vpack.c.bf16 %v258, %v258
    %v403 = vpack.c.bf16 %v259, %v259
    %v404 = vpack.c.bf16 %v292, %v292
    %v405 = vpack.c.bf16 %v293, %v293
    %v406 = vpack.c.bf16 %v294, %v294
    %v407 = vpack.c.bf16 %v295, %v295
    %v408 = vpack.c.bf16 %v328, %v328
    %v409 = vpack.c.bf16 %v329, %v329
    %v410 = vpack.c.bf16 %v330, %v330
    %v411 = vpack.c.bf16 %v331, %v331
    %v412 = vpack.c.bf16 %v364, %v364
    %v413 = vpack.c.bf16 %v365, %v365
    %v414 = vpack.c.bf16 %v366, %v366
    %v415 = vpack.c.bf16 %v367, %v367
    %v416 = vld [vmem:[#allocation2] sm:$0xff]
    %v417 = vld [vmem:[#allocation2 + $0x8] sm:$0xff]
    %v418 = vld [vmem:[#allocation2 + $0x10] sm:$0xff]
    %v419 = vld [vmem:[#allocation2 + $0x18] sm:$0xff]
    %v420 = vld [vmem:[#allocation2 + $0x20] sm:$0xff]
    %v421 = vld [vmem:[#allocation2 + $0x28] sm:$0xff]
    %v422 = vld [vmem:[#allocation2 + $0x30] sm:$0xff]
    %v423 = vld [vmem:[#allocation2 + $0x38] sm:$0xff]
    %v424 = vld [vmem:[#allocation2 + $0x40] sm:$0xff]
    %v425 = vld [vmem:[#allocation2 + $0x48] sm:$0xff]
    %v426 = vld [vmem:[#allocation2 + $0x50] sm:$0xff]
    %v427 = vld [vmem:[#allocation2 + $0x58] sm:$0xff]
    %v428 = vld [vmem:[#allocation2 + $0x60] sm:$0xff]
    %v429 = vld [vmem:[#allocation2 + $0x68] sm:$0xff]
    %v430 = vld [vmem:[#allocation2 + $0x70] sm:$0xff]
    %v431 = vld [vmem:[#allocation2 + $0x78] sm:$0xff]
    %v432 = vld [vmem:[#allocation2 + $0x80] sm:$0xff]
    %v433 = vld [vmem:[#allocation2 + $0x88] sm:$0xff]
    %v434 = vld [vmem:[#allocation2 + $0x90] sm:$0xff]
    %v435 = vld [vmem:[#allocation2 + $0x98] sm:$0xff]
    %v436 = vld [vmem:[#allocation2 + $0xa0] sm:$0xff]
    %v437 = vld [vmem:[#allocation2 + $0xa8] sm:$0xff]
    %v438 = vld [vmem:[#allocation2 + $0xb0] sm:$0xff]
    %v439 = vld [vmem:[#allocation2 + $0xb8] sm:$0xff]
    %v440 = vld [vmem:[#allocation2 + $0xc0] sm:$0xff]
    %v441 = vld [vmem:[#allocation2 + $0xc8] sm:$0xff]
    %v442 = vld [vmem:[#allocation2 + $0xd0] sm:$0xff]
    %v443 = vld [vmem:[#allocation2 + $0xd8] sm:$0xff]
    %v444 = vld [vmem:[#allocation2 + $0xe0] sm:$0xff]
    %v445 = vld [vmem:[#allocation2 + $0xe8] sm:$0xff]
    %v446 = vld [vmem:[#allocation2 + $0xf0] sm:$0xff]
    %v447 = vld [vmem:[#allocation2 + $0xf8] sm:$0xff]
    %v448 = vld [vmem:[#allocation2 + $0x100] sm:$0xff]
    %v449 = vld [vmem:[#allocation2 + $0x108] sm:$0xff]
    %v450 = vld [vmem:[#allocation2 + $0x110] sm:$0xff]
    %v451 = vld [vmem:[#allocation2 + $0x118] sm:$0xff]
    %v452 = vld [vmem:[#allocation2 + $0x120] sm:$0xff]
    %v453 = vld [vmem:[#allocation2 + $0x128] sm:$0xff]
    %v454 = vld [vmem:[#allocation2 + $0x130] sm:$0xff]
    %v455 = vld [vmem:[#allocation2 + $0x138] sm:$0xff]
    %v456 = vld [vmem:[#allocation2 + $0x140] sm:$0xff]
    %v457 = vld [vmem:[#allocation2 + $0x148] sm:$0xff]
    %v458 = vld [vmem:[#allocation2 + $0x150] sm:$0xff]
    %v459 = vld [vmem:[#allocation2 + $0x158] sm:$0xff]
    %v460 = vld [vmem:[#allocation2 + $0x160] sm:$0xff]
    %v461 = vld [vmem:[#allocation2 + $0x168] sm:$0xff]
    %v462 = vld [vmem:[#allocation2 + $0x170] sm:$0xff]
    %v463 = vld [vmem:[#allocation2 + $0x178] sm:$0xff]
    %v464 = vld [vmem:[#allocation2 + $0x180] sm:$0xff]
    %v465 = vld [vmem:[#allocation2 + $0x188] sm:$0xff]
    %v466 = vld [vmem:[#allocation2 + $0x190] sm:$0xff]
    %v467 = vld [vmem:[#allocation2 + $0x198] sm:$0xff]
    %v468 = vld [vmem:[#allocation2 + $0x1a0] sm:$0xff]
    %v469 = vld [vmem:[#allocation2 + $0x1a8] sm:$0xff]
    %v470 = vld [vmem:[#allocation2 + $0x1b0] sm:$0xff]
    %v471 = vld [vmem:[#allocation2 + $0x1b8] sm:$0xff]
    %v472 = vld [vmem:[#allocation2 + $0x1c0] sm:$0xff]
    %v473 = vld [vmem:[#allocation2 + $0x1c8] sm:$0xff]
    %v474 = vld [vmem:[#allocation2 + $0x1d0] sm:$0xff]
    %v475 = vld [vmem:[#allocation2 + $0x1d8] sm:$0xff]
    %v476 = vld [vmem:[#allocation2 + $0x1e0] sm:$0xff]
    %v477 = vld [vmem:[#allocation2 + $0x1e8] sm:$0xff]
    %v478 = vld [vmem:[#allocation2 + $0x1f0] sm:$0xff]
    %v479 = vld [vmem:[#allocation2 + $0x1f8] sm:$0xff]
    %v480 = vld [vmem:[#allocation2 + $0x200] sm:$0xff]
    %v481 = vld [vmem:[#allocation2 + $0x208] sm:$0xff]
    %v482 = vld [vmem:[#allocation2 + $0x210] sm:$0xff]
    %v483 = vld [vmem:[#allocation2 + $0x218] sm:$0xff]
    %v484 = vld [vmem:[#allocation2 + $0x220] sm:$0xff]
    %v485 = vld [vmem:[#allocation2 + $0x228] sm:$0xff]
    %v486 = vld [vmem:[#allocation2 + $0x230] sm:$0xff]
    %v487 = vld [vmem:[#allocation2 + $0x238] sm:$0xff]
    %v488 = vld [vmem:[#allocation2 + $0x240] sm:$0xff]
    %v489 = vld [vmem:[#allocation2 + $0x248] sm:$0xff]
    %v490 = vld [vmem:[#allocation2 + $0x250] sm:$0xff]
    %v491 = vld [vmem:[#allocation2 + $0x258] sm:$0xff]
    %v492 = vld [vmem:[#allocation2 + $0x260] sm:$0xff]
    %v493 = vld [vmem:[#allocation2 + $0x268] sm:$0xff]
    %v494 = vld [vmem:[#allocation2 + $0x270] sm:$0xff]
    %v495 = vld [vmem:[#allocation2 + $0x278] sm:$0xff]
    %v496 = vld [vmem:[#allocation2 + $0x280] sm:$0xff]
    %v497 = vld [vmem:[#allocation2 + $0x288] sm:$0xff]
    %v498 = vld [vmem:[#allocation2 + $0x290] sm:$0xff]
    %v499 = vld [vmem:[#allocation2 + $0x298] sm:$0xff]
    %v500 = vld [vmem:[#allocation2 + $0x2a0] sm:$0xff]
    %v501 = vld [vmem:[#allocation2 + $0x2a8] sm:$0xff]
    %v502 = vld [vmem:[#allocation2 + $0x2b0] sm:$0xff]
    %v503 = vld [vmem:[#allocation2 + $0x2b8] sm:$0xff]
    %v504 = vld [vmem:[#allocation2 + $0x2c0] sm:$0xff]
    %v505 = vld [vmem:[#allocation2 + $0x2c8] sm:$0xff]
    %v506 = vld [vmem:[#allocation2 + $0x2d0] sm:$0xff]
    %v507 = vld [vmem:[#allocation2 + $0x2d8] sm:$0xff]
    %v508 = vld [vmem:[#allocation2 + $0x2e0] sm:$0xff]
    %v509 = vld [vmem:[#allocation2 + $0x2e8] sm:$0xff]
    %v510 = vld [vmem:[#allocation2 + $0x2f0] sm:$0xff]
    %v511 = vld [vmem:[#allocation2 + $0x2f8] sm:$0xff]
    %v512 = vld [vmem:[#allocation2 + $0x300] sm:$0xff]
    %v513 = vld [vmem:[#allocation2 + $0x308] sm:$0xff]
    %v514 = vld [vmem:[#allocation2 + $0x310] sm:$0xff]
    %v515 = vld [vmem:[#allocation2 + $0x318] sm:$0xff]
    %v516 = vld [vmem:[#allocation2 + $0x320] sm:$0xff]
    %v517 = vld [vmem:[#allocation2 + $0x328] sm:$0xff]
    %v518 = vld [vmem:[#allocation2 + $0x330] sm:$0xff]
    %v519 = vld [vmem:[#allocation2 + $0x338] sm:$0xff]
    %v520 = vld [vmem:[#allocation2 + $0x340] sm:$0xff]
    %v521 = vld [vmem:[#allocation2 + $0x348] sm:$0xff]
    %v522 = vld [vmem:[#allocation2 + $0x350] sm:$0xff]
    %v523 = vld [vmem:[#allocation2 + $0x358] sm:$0xff]
    %v524 = vld [vmem:[#allocation2 + $0x360] sm:$0xff]
    %v525 = vld [vmem:[#allocation2 + $0x368] sm:$0xff]
    %v526 = vld [vmem:[#allocation2 + $0x370] sm:$0xff]
    %v527 = vld [vmem:[#allocation2 + $0x378] sm:$0xff]
    %v528 = vld [vmem:[#allocation2 + $0x380] sm:$0xff]
    %v529 = vld [vmem:[#allocation2 + $0x388] sm:$0xff]
    %v530 = vld [vmem:[#allocation2 + $0x390] sm:$0xff]
    %v531 = vld [vmem:[#allocation2 + $0x398] sm:$0xff]
    %v532 = vld [vmem:[#allocation2 + $0x3a0] sm:$0xff]
    %v533 = vld [vmem:[#allocation2 + $0x3a8] sm:$0xff]
    %v534 = vld [vmem:[#allocation2 + $0x3b0] sm:$0xff]
    %v535 = vld [vmem:[#allocation2 + $0x3b8] sm:$0xff]
    %v536 = vld [vmem:[#allocation2 + $0x3c0] sm:$0xff]
    %v537 = vld [vmem:[#allocation2 + $0x3c8] sm:$0xff]
    %v538 = vld [vmem:[#allocation2 + $0x3d0] sm:$0xff]
    %v539 = vld [vmem:[#allocation2 + $0x3d8] sm:$0xff]
    %v540 = vld [vmem:[#allocation2 + $0x3e0] sm:$0xff]
    %v541 = vld [vmem:[#allocation2 + $0x3e8] sm:$0xff]
    %v542 = vld [vmem:[#allocation2 + $0x3f0] sm:$0xff]
    %v543 = vld [vmem:[#allocation2 + $0x3f8] sm:$0xff]
    %v544 = vld [vmem:[#allocation2 + $0x400] sm:$0xff]
    %v545 = vld [vmem:[#allocation2 + $0x408] sm:$0xff]
    %v546 = vld [vmem:[#allocation2 + $0x410] sm:$0xff]
    %v547 = vld [vmem:[#allocation2 + $0x418] sm:$0xff]
    %v548 = vld [vmem:[#allocation2 + $0x420] sm:$0xff]
    %v549 = vld [vmem:[#allocation2 + $0x428] sm:$0xff]
    %v550 = vld [vmem:[#allocation2 + $0x430] sm:$0xff]
    %v551 = vld [vmem:[#allocation2 + $0x438] sm:$0xff]
    %v552 = vld [vmem:[#allocation2 + $0x440] sm:$0xff]
    %v553 = vld [vmem:[#allocation2 + $0x448] sm:$0xff]
    %v554 = vld [vmem:[#allocation2 + $0x450] sm:$0xff]
    %v555 = vld [vmem:[#allocation2 + $0x458] sm:$0xff]
    %v556 = vld [vmem:[#allocation2 + $0x460] sm:$0xff]
    %v557 = vld [vmem:[#allocation2 + $0x468] sm:$0xff]
    %v558 = vld [vmem:[#allocation2 + $0x470] sm:$0xff]
    %v559 = vld [vmem:[#allocation2 + $0x478] sm:$0xff]
    %v560 = vld [vmem:[#allocation2 + $0x480] sm:$0xff]
    %v561 = vld [vmem:[#allocation2 + $0x488] sm:$0xff]
    %v562 = vld [vmem:[#allocation2 + $0x490] sm:$0xff]
    %v563 = vld [vmem:[#allocation2 + $0x498] sm:$0xff]
    %v564 = vld [vmem:[#allocation2 + $0x4a0] sm:$0xff]
    %v565 = vld [vmem:[#allocation2 + $0x4a8] sm:$0xff]
    %v566 = vld [vmem:[#allocation2 + $0x4b0] sm:$0xff]
    %v567 = vld [vmem:[#allocation2 + $0x4b8] sm:$0xff]
    %v568 = vld [vmem:[#allocation2 + $0x4c0] sm:$0xff]
    %v569 = vld [vmem:[#allocation2 + $0x4c8] sm:$0xff]
    %v570 = vld [vmem:[#allocation2 + $0x4d0] sm:$0xff]
    %v571 = vld [vmem:[#allocation2 + $0x4d8] sm:$0xff]
    %v572 = vld [vmem:[#allocation2 + $0x4e0] sm:$0xff]
    %v573 = vld [vmem:[#allocation2 + $0x4e8] sm:$0xff]
    %v574 = vld [vmem:[#allocation2 + $0x4f0] sm:$0xff]
    %v575 = vld [vmem:[#allocation2 + $0x4f8] sm:$0xff]
    %v576 = vld [vmem:[#allocation2 + $0x500] sm:$0xff]
    %v577 = vld [vmem:[#allocation2 + $0x508] sm:$0xff]
    %v578 = vld [vmem:[#allocation2 + $0x510] sm:$0xff]
    %v579 = vld [vmem:[#allocation2 + $0x518] sm:$0xff]
    %v580 = vld [vmem:[#allocation2 + $0x520] sm:$0xff]
    %v581 = vld [vmem:[#allocation2 + $0x528] sm:$0xff]
    %v582 = vld [vmem:[#allocation2 + $0x530] sm:$0xff]
    %v583 = vld [vmem:[#allocation2 + $0x538] sm:$0xff]
    %v584 = vld [vmem:[#allocation2 + $0x540] sm:$0xff]
    %v585 = vld [vmem:[#allocation2 + $0x548] sm:$0xff]
    %v586 = vld [vmem:[#allocation2 + $0x550] sm:$0xff]
    %v587 = vld [vmem:[#allocation2 + $0x558] sm:$0xff]
    %v588 = vld [vmem:[#allocation2 + $0x560] sm:$0xff]
    %v589 = vld [vmem:[#allocation2 + $0x568] sm:$0xff]
    %v590 = vld [vmem:[#allocation2 + $0x570] sm:$0xff]
    %v591 = vld [vmem:[#allocation2 + $0x578] sm:$0xff]
    %v592 = vld [vmem:[#allocation2 + $0x580] sm:$0xff]
    %v593 = vld [vmem:[#allocation2 + $0x588] sm:$0xff]
    %v594 = vld [vmem:[#allocation2 + $0x590] sm:$0xff]
    %v595 = vld [vmem:[#allocation2 + $0x598] sm:$0xff]
    %v596 = vld [vmem:[#allocation2 + $0x5a0] sm:$0xff]
    %v597 = vld [vmem:[#allocation2 + $0x5a8] sm:$0xff]
    %v598 = vld [vmem:[#allocation2 + $0x5b0] sm:$0xff]
    %v599 = vld [vmem:[#allocation2 + $0x5b8] sm:$0xff]
    %v600 = vld [vmem:[#allocation2 + $0x5c0] sm:$0xff]
    %v601 = vld [vmem:[#allocation2 + $0x5c8] sm:$0xff]
    %v602 = vld [vmem:[#allocation2 + $0x5d0] sm:$0xff]
    %v603 = vld [vmem:[#allocation2 + $0x5d8] sm:$0xff]
    %v604 = vld [vmem:[#allocation2 + $0x5e0] sm:$0xff]
    %v605 = vld [vmem:[#allocation2 + $0x5e8] sm:$0xff]
    %v606 = vld [vmem:[#allocation2 + $0x5f0] sm:$0xff]
    %v607 = vld [vmem:[#allocation2 + $0x5f8] sm:$0xff]
    %v608 = vld [vmem:[#allocation2 + $0x600] sm:$0xff]
    %v609 = vld [vmem:[#allocation2 + $0x608] sm:$0xff]
    %v610 = vld [vmem:[#allocation2 + $0x610] sm:$0xff]
    %v611 = vld [vmem:[#allocation2 + $0x618] sm:$0xff]
    %v612 = vld [vmem:[#allocation2 + $0x620] sm:$0xff]
    %v613 = vld [vmem:[#allocation2 + $0x628] sm:$0xff]
    %v614 = vld [vmem:[#allocation2 + $0x630] sm:$0xff]
    %v615 = vld [vmem:[#allocation2 + $0x638] sm:$0xff]
    %v616 = vld [vmem:[#allocation2 + $0x640] sm:$0xff]
    %v617 = vld [vmem:[#allocation2 + $0x648] sm:$0xff]
    %v618 = vld [vmem:[#allocation2 + $0x650] sm:$0xff]
    %v619 = vld [vmem:[#allocation2 + $0x658] sm:$0xff]
    %v620 = vld [vmem:[#allocation2 + $0x660] sm:$0xff]
    %v621 = vld [vmem:[#allocation2 + $0x668] sm:$0xff]
    %v622 = vld [vmem:[#allocation2 + $0x670] sm:$0xff]
    %v623 = vld [vmem:[#allocation2 + $0x678] sm:$0xff]
    %v624 = vld [vmem:[#allocation2 + $0x680] sm:$0xff]
    %v625 = vld [vmem:[#allocation2 + $0x688] sm:$0xff]
    %v626 = vld [vmem:[#allocation2 + $0x690] sm:$0xff]
    %v627 = vld [vmem:[#allocation2 + $0x698] sm:$0xff]
    %v628 = vld [vmem:[#allocation2 + $0x6a0] sm:$0xff]
    %v629 = vld [vmem:[#allocation2 + $0x6a8] sm:$0xff]
    %v630 = vld [vmem:[#allocation2 + $0x6b0] sm:$0xff]
    %v631 = vld [vmem:[#allocation2 + $0x6b8] sm:$0xff]
    %v632 = vld [vmem:[#allocation2 + $0x6c0] sm:$0xff]
    %v633 = vld [vmem:[#allocation2 + $0x6c8] sm:$0xff]
    %v634 = vld [vmem:[#allocation2 + $0x6d0] sm:$0xff]
    %v635 = vld [vmem:[#allocation2 + $0x6d8] sm:$0xff]
    %v636 = vld [vmem:[#allocation2 + $0x6e0] sm:$0xff]
    %v637 = vld [vmem:[#allocation2 + $0x6e8] sm:$0xff]
    %v638 = vld [vmem:[#allocation2 + $0x6f0] sm:$0xff]
    %v639 = vld [vmem:[#allocation2 + $0x6f8] sm:$0xff]
    %v640 = vld [vmem:[#allocation2 + $0x700] sm:$0xff]
    %v641 = vld [vmem:[#allocation2 + $0x708] sm:$0xff]
    %v642 = vld [vmem:[#allocation2 + $0x710] sm:$0xff]
    %v643 = vld [vmem:[#allocation2 + $0x718] sm:$0xff]
    %v644 = vld [vmem:[#allocation2 + $0x720] sm:$0xff]
    %v645 = vld [vmem:[#allocation2 + $0x728] sm:$0xff]
    %v646 = vld [vmem:[#allocation2 + $0x730] sm:$0xff]
    %v647 = vld [vmem:[#allocation2 + $0x738] sm:$0xff]
    %v648 = vld [vmem:[#allocation2 + $0x740] sm:$0xff]
    %v649 = vld [vmem:[#allocation2 + $0x748] sm:$0xff]
    %v650 = vld [vmem:[#allocation2 + $0x750] sm:$0xff]
    %v651 = vld [vmem:[#allocation2 + $0x758] sm:$0xff]
    %v652 = vld [vmem:[#allocation2 + $0x760] sm:$0xff]
    %v653 = vld [vmem:[#allocation2 + $0x768] sm:$0xff]
    %v654 = vld [vmem:[#allocation2 + $0x770] sm:$0xff]
    %v655 = vld [vmem:[#allocation2 + $0x778] sm:$0xff]
    %v656 = vld [vmem:[#allocation2 + $0x780] sm:$0xff]
    %v657 = vld [vmem:[#allocation2 + $0x788] sm:$0xff]
    %v658 = vld [vmem:[#allocation2 + $0x790] sm:$0xff]
    %v659 = vld [vmem:[#allocation2 + $0x798] sm:$0xff]
    %v660 = vld [vmem:[#allocation2 + $0x7a0] sm:$0xff]
    %v661 = vld [vmem:[#allocation2 + $0x7a8] sm:$0xff]
    %v662 = vld [vmem:[#allocation2 + $0x7b0] sm:$0xff]
    %v663 = vld [vmem:[#allocation2 + $0x7b8] sm:$0xff]
    %v664 = vld [vmem:[#allocation2 + $0x7c0] sm:$0xff]
    %v665 = vld [vmem:[#allocation2 + $0x7c8] sm:$0xff]
    %v666 = vld [vmem:[#allocation2 + $0x7d0] sm:$0xff]
    %v667 = vld [vmem:[#allocation2 + $0x7d8] sm:$0xff]
    %v668 = vld [vmem:[#allocation2 + $0x7e0] sm:$0xff]
    %v669 = vld [vmem:[#allocation2 + $0x7e8] sm:$0xff]
    %v670 = vld [vmem:[#allocation2 + $0x7f0] sm:$0xff]
    %v671 = vld [vmem:[#allocation2 + $0x7f8] sm:$0xff]
    %v672 = vld [vmem:[#allocation2 + $0x800] sm:$0xff]
    %v673 = vld [vmem:[#allocation2 + $0x808] sm:$0xff]
    %v674 = vld [vmem:[#allocation2 + $0x810] sm:$0xff]
    %v675 = vld [vmem:[#allocation2 + $0x818] sm:$0xff]
    %v676 = vld [vmem:[#allocation2 + $0x820] sm:$0xff]
    %v677 = vld [vmem:[#allocation2 + $0x828] sm:$0xff]
    %v678 = vld [vmem:[#allocation2 + $0x830] sm:$0xff]
    %v679 = vld [vmem:[#allocation2 + $0x838] sm:$0xff]
    %v680 = vld [vmem:[#allocation2 + $0x840] sm:$0xff]
    %v681 = vld [vmem:[#allocation2 + $0x848] sm:$0xff]
    %v682 = vld [vmem:[#allocation2 + $0x850] sm:$0xff]
    %v683 = vld [vmem:[#allocation2 + $0x858] sm:$0xff]
    %v684 = vld [vmem:[#allocation2 + $0x860] sm:$0xff]
    %v685 = vld [vmem:[#allocation2 + $0x868] sm:$0xff]
    %v686 = vld [vmem:[#allocation2 + $0x870] sm:$0xff]
    %v687 = vld [vmem:[#allocation2 + $0x878] sm:$0xff]
    %v688 = vld [vmem:[#allocation2 + $0x880] sm:$0xff]
    %v689 = vld [vmem:[#allocation2 + $0x888] sm:$0xff]
    %v690 = vld [vmem:[#allocation2 + $0x890] sm:$0xff]
    %v691 = vld [vmem:[#allocation2 + $0x898] sm:$0xff]
    %v692 = vld [vmem:[#allocation2 + $0x8a0] sm:$0xff]
    %v693 = vld [vmem:[#allocation2 + $0x8a8] sm:$0xff]
    %v694 = vld [vmem:[#allocation2 + $0x8b0] sm:$0xff]
    %v695 = vld [vmem:[#allocation2 + $0x8b8] sm:$0xff]
    %v696 = vld [vmem:[#allocation2 + $0x8c0] sm:$0xff]
    %v697 = vld [vmem:[#allocation2 + $0x8c8] sm:$0xff]
    %v698 = vld [vmem:[#allocation2 + $0x8d0] sm:$0xff]
    %v699 = vld [vmem:[#allocation2 + $0x8d8] sm:$0xff]
    %v700 = vld [vmem:[#allocation2 + $0x8e0] sm:$0xff]
    %v701 = vld [vmem:[#allocation2 + $0x8e8] sm:$0xff]
    %v702 = vld [vmem:[#allocation2 + $0x8f0] sm:$0xff]
    %v703 = vld [vmem:[#allocation2 + $0x8f8] sm:$0xff]
    %v704 = vld [vmem:[#allocation2 + $0x900] sm:$0xff]
    %v705 = vld [vmem:[#allocation2 + $0x908] sm:$0xff]
    %v706 = vld [vmem:[#allocation2 + $0x910] sm:$0xff]
    %v707 = vld [vmem:[#allocation2 + $0x918] sm:$0xff]
    %v708 = vld [vmem:[#allocation2 + $0x920] sm:$0xff]
    %v709 = vld [vmem:[#allocation2 + $0x928] sm:$0xff]
    %v710 = vld [vmem:[#allocation2 + $0x930] sm:$0xff]
    %v711 = vld [vmem:[#allocation2 + $0x938] sm:$0xff]
    %v712 = vld [vmem:[#allocation2 + $0x940] sm:$0xff]
    %v713 = vld [vmem:[#allocation2 + $0x948] sm:$0xff]
    %v714 = vld [vmem:[#allocation2 + $0x950] sm:$0xff]
    %v715 = vld [vmem:[#allocation2 + $0x958] sm:$0xff]
    %v716 = vld [vmem:[#allocation2 + $0x960] sm:$0xff]
    %v717 = vld [vmem:[#allocation2 + $0x968] sm:$0xff]
    %v718 = vld [vmem:[#allocation2 + $0x970] sm:$0xff]
    %v719 = vld [vmem:[#allocation2 + $0x978] sm:$0xff]
    %v720 = vld [vmem:[#allocation2 + $0x980] sm:$0xff]
    %v721 = vld [vmem:[#allocation2 + $0x988] sm:$0xff]
    %v722 = vld [vmem:[#allocation2 + $0x990] sm:$0xff]
    %v723 = vld [vmem:[#allocation2 + $0x998] sm:$0xff]
    %v724 = vld [vmem:[#allocation2 + $0x9a0] sm:$0xff]
    %v725 = vld [vmem:[#allocation2 + $0x9a8] sm:$0xff]
    %v726 = vld [vmem:[#allocation2 + $0x9b0] sm:$0xff]
    %v727 = vld [vmem:[#allocation2 + $0x9b8] sm:$0xff]
    %v728 = vld [vmem:[#allocation2 + $0x9c0] sm:$0xff]
    %v729 = vld [vmem:[#allocation2 + $0x9c8] sm:$0xff]
    %v730 = vld [vmem:[#allocation2 + $0x9d0] sm:$0xff]
    %v731 = vld [vmem:[#allocation2 + $0x9d8] sm:$0xff]
    %v732 = vld [vmem:[#allocation2 + $0x9e0] sm:$0xff]
    %v733 = vld [vmem:[#allocation2 + $0x9e8] sm:$0xff]
    %v734 = vld [vmem:[#allocation2 + $0x9f0] sm:$0xff]
    %v735 = vld [vmem:[#allocation2 + $0x9f8] sm:$0xff]
    %v736 = vld [vmem:[#allocation2 + $0xa00] sm:$0xff]
    %v737 = vld [vmem:[#allocation2 + $0xa08] sm:$0xff]
    %v738 = vld [vmem:[#allocation2 + $0xa10] sm:$0xff]
    %v739 = vld [vmem:[#allocation2 + $0xa18] sm:$0xff]
    %v740 = vld [vmem:[#allocation2 + $0xa20] sm:$0xff]
    %v741 = vld [vmem:[#allocation2 + $0xa28] sm:$0xff]
    %v742 = vld [vmem:[#allocation2 + $0xa30] sm:$0xff]
    %v743 = vld [vmem:[#allocation2 + $0xa38] sm:$0xff]
    %v744 = vld [vmem:[#allocation2 + $0xa40] sm:$0xff]
    %v745 = vld [vmem:[#allocation2 + $0xa48] sm:$0xff]
    %v746 = vld [vmem:[#allocation2 + $0xa50] sm:$0xff]
    %v747 = vld [vmem:[#allocation2 + $0xa58] sm:$0xff]
    %v748 = vld [vmem:[#allocation2 + $0xa60] sm:$0xff]
    %v749 = vld [vmem:[#allocation2 + $0xa68] sm:$0xff]
    %v750 = vld [vmem:[#allocation2 + $0xa70] sm:$0xff]
    %v751 = vld [vmem:[#allocation2 + $0xa78] sm:$0xff]
    %v752 = vld [vmem:[#allocation2 + $0xa80] sm:$0xff]
    %v753 = vld [vmem:[#allocation2 + $0xa88] sm:$0xff]
    %v754 = vld [vmem:[#allocation2 + $0xa90] sm:$0xff]
    %v755 = vld [vmem:[#allocation2 + $0xa98] sm:$0xff]
    %v756 = vld [vmem:[#allocation2 + $0xaa0] sm:$0xff]
    %v757 = vld [vmem:[#allocation2 + $0xaa8] sm:$0xff]
    %v758 = vld [vmem:[#allocation2 + $0xab0] sm:$0xff]
    %v759 = vld [vmem:[#allocation2 + $0xab8] sm:$0xff]
    %v760 = vld [vmem:[#allocation2 + $0xac0] sm:$0xff]
    %v761 = vld [vmem:[#allocation2 + $0xac8] sm:$0xff]
    %v762 = vld [vmem:[#allocation2 + $0xad0] sm:$0xff]
    %v763 = vld [vmem:[#allocation2 + $0xad8] sm:$0xff]
    %v764 = vld [vmem:[#allocation2 + $0xae0] sm:$0xff]
    %v765 = vld [vmem:[#allocation2 + $0xae8] sm:$0xff]
    %v766 = vld [vmem:[#allocation2 + $0xaf0] sm:$0xff]
    %v767 = vld [vmem:[#allocation2 + $0xaf8] sm:$0xff]
    %v768 = vld [vmem:[#allocation2 + $0xb00] sm:$0xff]
    %v769 = vld [vmem:[#allocation2 + $0xb08] sm:$0xff]
    %v770 = vld [vmem:[#allocation2 + $0xb10] sm:$0xff]
    %v771 = vld [vmem:[#allocation2 + $0xb18] sm:$0xff]
    %v772 = vld [vmem:[#allocation2 + $0xb20] sm:$0xff]
    %v773 = vld [vmem:[#allocation2 + $0xb28] sm:$0xff]
    %v774 = vld [vmem:[#allocation2 + $0xb30] sm:$0xff]
    %v775 = vld [vmem:[#allocation2 + $0xb38] sm:$0xff]
    %v776 = vld [vmem:[#allocation2 + $0xb40] sm:$0xff]
    %v777 = vld [vmem:[#allocation2 + $0xb48] sm:$0xff]
    %v778 = vld [vmem:[#allocation2 + $0xb50] sm:$0xff]
    %v779 = vld [vmem:[#allocation2 + $0xb58] sm:$0xff]
    %v780 = vld [vmem:[#allocation2 + $0xb60] sm:$0xff]
    %v781 = vld [vmem:[#allocation2 + $0xb68] sm:$0xff]
    %v782 = vld [vmem:[#allocation2 + $0xb70] sm:$0xff]
    %v783 = vld [vmem:[#allocation2 + $0xb78] sm:$0xff]
    %v784 = vld [vmem:[#allocation2 + $0xb80] sm:$0xff]
    %v785 = vld [vmem:[#allocation2 + $0xb88] sm:$0xff]
    %v786 = vld [vmem:[#allocation2 + $0xb90] sm:$0xff]
    %v787 = vld [vmem:[#allocation2 + $0xb98] sm:$0xff]
    %v788 = vld [vmem:[#allocation2 + $0xba0] sm:$0xff]
    %v789 = vld [vmem:[#allocation2 + $0xba8] sm:$0xff]
    %v790 = vld [vmem:[#allocation2 + $0xbb0] sm:$0xff]
    %v791 = vld [vmem:[#allocation2 + $0xbb8] sm:$0xff]
    %v792 = vld [vmem:[#allocation2 + $0xbc0] sm:$0xff]
    %v793 = vld [vmem:[#allocation2 + $0xbc8] sm:$0xff]
    %v794 = vld [vmem:[#allocation2 + $0xbd0] sm:$0xff]
    %v795 = vld [vmem:[#allocation2 + $0xbd8] sm:$0xff]
    %v796 = vld [vmem:[#allocation2 + $0xbe0] sm:$0xff]
    %v797 = vld [vmem:[#allocation2 + $0xbe8] sm:$0xff]
    %v798 = vld [vmem:[#allocation2 + $0xbf0] sm:$0xff]
    %v799 = vld [vmem:[#allocation2 + $0xbf8] sm:$0xff]
    %v800 = vld [vmem:[#allocation5] sm:$0x3]
    %v802 = vlaneseq
    %v803 = vshrl.u32 %v802, 7
    %v804 = vsub.s32 0, %v803
    %v805 = vrot.slane %v800, %v804
    %v806 = vlaneseq
    %v807 = vshrl.u32 %v806, 7
    %v808 = vsub.s32 1, %v807
    %v809 = vrot.slane %v800, %v808
    %v1196 = vunpack.c.l.b16 %v416
    %v1197 = vunpack.c.h.b16 %v416
    %v1198 = vunpack.c.l.b16 %v417
    %v1199 = vunpack.c.h.b16 %v417
    %v1200 = vunpack.c.l.b16 %v418
    %v1201 = vunpack.c.h.b16 %v418
    %v1202 = vunpack.c.l.b16 %v419
    %v1203 = vunpack.c.h.b16 %v419
    %v1204 = vunpack.c.l.b16 %v420
    %v1205 = vunpack.c.h.b16 %v420
    %v1206 = vunpack.c.l.b16 %v421
    %v1207 = vunpack.c.h.b16 %v421
    %v1208 = vunpack.c.l.b16 %v422
    %v1209 = vunpack.c.h.b16 %v422
    %v1210 = vunpack.c.l.b16 %v423
    %v1211 = vunpack.c.h.b16 %v423
    %v1212 = vunpack.c.l.b16 %v424
    %v1213 = vunpack.c.h.b16 %v424
    %v1214 = vunpack.c.l.b16 %v425
    %v1215 = vunpack.c.h.b16 %v425
    %v1216 = vunpack.c.l.b16 %v426
    %v1217 = vunpack.c.h.b16 %v426
    %v1218 = vunpack.c.l.b16 %v427
    %v1219 = vunpack.c.h.b16 %v427
    %v1220 = vunpack.c.l.b16 %v428
    %v1221 = vunpack.c.h.b16 %v428
    %v1222 = vunpack.c.l.b16 %v429
    %v1223 = vunpack.c.h.b16 %v429
    %v1224 = vunpack.c.l.b16 %v430
    %v1225 = vunpack.c.h.b16 %v430
    %v1226 = vunpack.c.l.b16 %v431
    %v1227 = vunpack.c.h.b16 %v431
    %v1228 = vunpack.c.l.b16 %v432
    %v1229 = vunpack.c.h.b16 %v432
    %v1230 = vunpack.c.l.b16 %v433
    %v1231 = vunpack.c.h.b16 %v433
    %v1232 = vunpack.c.l.b16 %v434
    %v1233 = vunpack.c.h.b16 %v434
    %v1234 = vunpack.c.l.b16 %v435
    %v1235 = vunpack.c.h.b16 %v435
    %v1236 = vunpack.c.l.b16 %v436
    %v1237 = vunpack.c.h.b16 %v436
    %v1238 = vunpack.c.l.b16 %v437
    %v1239 = vunpack.c.h.b16 %v437
    %v1240 = vunpack.c.l.b16 %v438
    %v1241 = vunpack.c.h.b16 %v438
    %v1242 = vunpack.c.l.b16 %v439
    %v1243 = vunpack.c.h.b16 %v439
    %v1244 = vunpack.c.l.b16 %v440
    %v1245 = vunpack.c.h.b16 %v440
    %v1246 = vunpack.c.l.b16 %v441
    %v1247 = vunpack.c.h.b16 %v441
    %v1248 = vunpack.c.l.b16 %v442
    %v1249 = vunpack.c.h.b16 %v442
    %v1250 = vunpack.c.l.b16 %v443
    %v1251 = vunpack.c.h.b16 %v443
    %v1252 = vunpack.c.l.b16 %v444
    %v1253 = vunpack.c.h.b16 %v444
    %v1254 = vunpack.c.l.b16 %v445
    %v1255 = vunpack.c.h.b16 %v445
    %v1256 = vunpack.c.l.b16 %v446
    %v1257 = vunpack.c.h.b16 %v446
    %v1258 = vunpack.c.l.b16 %v447
    %v1259 = vunpack.c.h.b16 %v447
    %v1260 = vunpack.c.l.b16 %v448
    %v1261 = vunpack.c.h.b16 %v448
    %v1262 = vunpack.c.l.b16 %v449
    %v1263 = vunpack.c.h.b16 %v449
    %v1264 = vunpack.c.l.b16 %v450
    %v1265 = vunpack.c.h.b16 %v450
    %v1266 = vunpack.c.l.b16 %v451
    %v1267 = vunpack.c.h.b16 %v451
    %v1268 = vunpack.c.l.b16 %v452
    %v1269 = vunpack.c.h.b16 %v452
    %v1270 = vunpack.c.l.b16 %v453
    %v1271 = vunpack.c.h.b16 %v453
    %v1272 = vunpack.c.l.b16 %v454
    %v1273 = vunpack.c.h.b16 %v454
    %v1274 = vunpack.c.l.b16 %v455
    %v1275 = vunpack.c.h.b16 %v455
    %v1276 = vunpack.c.l.b16 %v456
    %v1277 = vunpack.c.h.b16 %v456
    %v1278 = vunpack.c.l.b16 %v457
    %v1279 = vunpack.c.h.b16 %v457
    %v1280 = vunpack.c.l.b16 %v458
    %v1281 = vunpack.c.h.b16 %v458
    %v1282 = vunpack.c.l.b16 %v459
    %v1283 = vunpack.c.h.b16 %v459
    %v1284 = vunpack.c.l.b16 %v460
    %v1285 = vunpack.c.h.b16 %v460
    %v1286 = vunpack.c.l.b16 %v461
    %v1287 = vunpack.c.h.b16 %v461
    %v1288 = vunpack.c.l.b16 %v462
    %v1289 = vunpack.c.h.b16 %v462
    %v1290 = vunpack.c.l.b16 %v463
    %v1291 = vunpack.c.h.b16 %v463
    %v1292 = vunpack.c.l.b16 %v464
    %v1293 = vunpack.c.h.b16 %v464
    %v1294 = vunpack.c.l.b16 %v465
    %v1295 = vunpack.c.h.b16 %v465
    %v1296 = vunpack.c.l.b16 %v466
    %v1297 = vunpack.c.h.b16 %v466
    %v1298 = vunpack.c.l.b16 %v467
    %v1299 = vunpack.c.h.b16 %v467
    %v1300 = vunpack.c.l.b16 %v468
    %v1301 = vunpack.c.h.b16 %v468
    %v1302 = vunpack.c.l.b16 %v469
    %v1303 = vunpack.c.h.b16 %v469
    %v1304 = vunpack.c.l.b16 %v470
    %v1305 = vunpack.c.h.b16 %v470
    %v1306 = vunpack.c.l.b16 %v471
    %v1307 = vunpack.c.h.b16 %v471
    %v1308 = vunpack.c.l.b16 %v472
    %v1309 = vunpack.c.h.b16 %v472
    %v1310 = vunpack.c.l.b16 %v473
    %v1311 = vunpack.c.h.b16 %v473
    %v1312 = vunpack.c.l.b16 %v474
    %v1313 = vunpack.c.h.b16 %v474
    %v1314 = vunpack.c.l.b16 %v475
    %v1315 = vunpack.c.h.b16 %v475
    %v1316 = vunpack.c.l.b16 %v476
    %v1317 = vunpack.c.h.b16 %v476
    %v1318 = vunpack.c.l.b16 %v477
    %v1319 = vunpack.c.h.b16 %v477
    %v1320 = vunpack.c.l.b16 %v478
    %v1321 = vunpack.c.h.b16 %v478
    %v1322 = vunpack.c.l.b16 %v479
    %v1323 = vunpack.c.h.b16 %v479
    %v1324 = vunpack.c.l.b16 %v480
    %v1325 = vunpack.c.h.b16 %v480
    %v1326 = vunpack.c.l.b16 %v481
    %v1327 = vunpack.c.h.b16 %v481
    %v1328 = vunpack.c.l.b16 %v482
    %v1329 = vunpack.c.h.b16 %v482
    %v1330 = vunpack.c.l.b16 %v483
    %v1331 = vunpack.c.h.b16 %v483
    %v1332 = vunpack.c.l.b16 %v484
    %v1333 = vunpack.c.h.b16 %v484
    %v1334 = vunpack.c.l.b16 %v485
    %v1335 = vunpack.c.h.b16 %v485
    %v1336 = vunpack.c.l.b16 %v486
    %v1337 = vunpack.c.h.b16 %v486
    %v1338 = vunpack.c.l.b16 %v487
    %v1339 = vunpack.c.h.b16 %v487
    %v1340 = vunpack.c.l.b16 %v488
    %v1341 = vunpack.c.h.b16 %v488
    %v1342 = vunpack.c.l.b16 %v489
    %v1343 = vunpack.c.h.b16 %v489
    %v1344 = vunpack.c.l.b16 %v490
    %v1345 = vunpack.c.h.b16 %v490
    %v1346 = vunpack.c.l.b16 %v491
    %v1347 = vunpack.c.h.b16 %v491
    %v1348 = vunpack.c.l.b16 %v492
    %v1349 = vunpack.c.h.b16 %v492
    %v1350 = vunpack.c.l.b16 %v493
    %v1351 = vunpack.c.h.b16 %v493
    %v1352 = vunpack.c.l.b16 %v494
    %v1353 = vunpack.c.h.b16 %v494
    %v1354 = vunpack.c.l.b16 %v495
    %v1355 = vunpack.c.h.b16 %v495
    %v1356 = vunpack.c.l.b16 %v496
    %v1357 = vunpack.c.h.b16 %v496
    %v1358 = vunpack.c.l.b16 %v497
    %v1359 = vunpack.c.h.b16 %v497
    %v1360 = vunpack.c.l.b16 %v498
    %v1361 = vunpack.c.h.b16 %v498
    %v1362 = vunpack.c.l.b16 %v499
    %v1363 = vunpack.c.h.b16 %v499
    %v1364 = vunpack.c.l.b16 %v500
    %v1365 = vunpack.c.h.b16 %v500
    %v1366 = vunpack.c.l.b16 %v501
    %v1367 = vunpack.c.h.b16 %v501
    %v1368 = vunpack.c.l.b16 %v502
    %v1369 = vunpack.c.h.b16 %v502
    %v1370 = vunpack.c.l.b16 %v503
    %v1371 = vunpack.c.h.b16 %v503
    %v1372 = vunpack.c.l.b16 %v504
    %v1373 = vunpack.c.h.b16 %v504
    %v1374 = vunpack.c.l.b16 %v505
    %v1375 = vunpack.c.h.b16 %v505
    %v1376 = vunpack.c.l.b16 %v506
    %v1377 = vunpack.c.h.b16 %v506
    %v1378 = vunpack.c.l.b16 %v507
    %v1379 = vunpack.c.h.b16 %v507
    %v1380 = vunpack.c.l.b16 %v508
    %v1381 = vunpack.c.h.b16 %v508
    %v1382 = vunpack.c.l.b16 %v509
    %v1383 = vunpack.c.h.b16 %v509
    %v1384 = vunpack.c.l.b16 %v510
    %v1385 = vunpack.c.h.b16 %v510
    %v1386 = vunpack.c.l.b16 %v511
    %v1387 = vunpack.c.h.b16 %v511
    %v1388 = vunpack.c.l.b16 %v512
    %v1389 = vunpack.c.h.b16 %v512
    %v1390 = vunpack.c.l.b16 %v513
    %v1391 = vunpack.c.h.b16 %v513
    %v1392 = vunpack.c.l.b16 %v514
    %v1393 = vunpack.c.h.b16 %v514
    %v1394 = vunpack.c.l.b16 %v515
    %v1395 = vunpack.c.h.b16 %v515
    %v1396 = vunpack.c.l.b16 %v516
    %v1397 = vunpack.c.h.b16 %v516
    %v1398 = vunpack.c.l.b16 %v517
    %v1399 = vunpack.c.h.b16 %v517
    %v1400 = vunpack.c.l.b16 %v518
    %v1401 = vunpack.c.h.b16 %v518
    %v1402 = vunpack.c.l.b16 %v519
    %v1403 = vunpack.c.h.b16 %v519
    %v1404 = vunpack.c.l.b16 %v520
    %v1405 = vunpack.c.h.b16 %v520
    %v1406 = vunpack.c.l.b16 %v521
    %v1407 = vunpack.c.h.b16 %v521
    %v1408 = vunpack.c.l.b16 %v522
    %v1409 = vunpack.c.h.b16 %v522
    %v1410 = vunpack.c.l.b16 %v523
    %v1411 = vunpack.c.h.b16 %v523
    %v1412 = vunpack.c.l.b16 %v524
    %v1413 = vunpack.c.h.b16 %v524
    %v1414 = vunpack.c.l.b16 %v525
    %v1415 = vunpack.c.h.b16 %v525
    %v1416 = vunpack.c.l.b16 %v526
    %v1417 = vunpack.c.h.b16 %v526
    %v1418 = vunpack.c.l.b16 %v527
    %v1419 = vunpack.c.h.b16 %v527
    %v1420 = vunpack.c.l.b16 %v528
    %v1421 = vunpack.c.h.b16 %v528
    %v1422 = vunpack.c.l.b16 %v529
    %v1423 = vunpack.c.h.b16 %v529
    %v1424 = vunpack.c.l.b16 %v530
    %v1425 = vunpack.c.h.b16 %v530
    %v1426 = vunpack.c.l.b16 %v531
    %v1427 = vunpack.c.h.b16 %v531
    %v1428 = vunpack.c.l.b16 %v532
    %v1429 = vunpack.c.h.b16 %v532
    %v1430 = vunpack.c.l.b16 %v533
    %v1431 = vunpack.c.h.b16 %v533
    %v1432 = vunpack.c.l.b16 %v534
    %v1433 = vunpack.c.h.b16 %v534
    %v1434 = vunpack.c.l.b16 %v535
    %v1435 = vunpack.c.h.b16 %v535
    %v1436 = vunpack.c.l.b16 %v536
    %v1437 = vunpack.c.h.b16 %v536
    %v1438 = vunpack.c.l.b16 %v537
    %v1439 = vunpack.c.h.b16 %v537
    %v1440 = vunpack.c.l.b16 %v538
    %v1441 = vunpack.c.h.b16 %v538
    %v1442 = vunpack.c.l.b16 %v539
    %v1443 = vunpack.c.h.b16 %v539
    %v1444 = vunpack.c.l.b16 %v540
    %v1445 = vunpack.c.h.b16 %v540
    %v1446 = vunpack.c.l.b16 %v541
    %v1447 = vunpack.c.h.b16 %v541
    %v1448 = vunpack.c.l.b16 %v542
    %v1449 = vunpack.c.h.b16 %v542
    %v1450 = vunpack.c.l.b16 %v543
    %v1451 = vunpack.c.h.b16 %v543
    %v1452 = vunpack.c.l.b16 %v544
    %v1453 = vunpack.c.h.b16 %v544
    %v1454 = vunpack.c.l.b16 %v545
    %v1455 = vunpack.c.h.b16 %v545
    %v1456 = vunpack.c.l.b16 %v546
    %v1457 = vunpack.c.h.b16 %v546
    %v1458 = vunpack.c.l.b16 %v547
    %v1459 = vunpack.c.h.b16 %v547
    %v1460 = vunpack.c.l.b16 %v548
    %v1461 = vunpack.c.h.b16 %v548
    %v1462 = vunpack.c.l.b16 %v549
    %v1463 = vunpack.c.h.b16 %v549
    %v1464 = vunpack.c.l.b16 %v550
    %v1465 = vunpack.c.h.b16 %v550
    %v1466 = vunpack.c.l.b16 %v551
    %v1467 = vunpack.c.h.b16 %v551
    %v1468 = vunpack.c.l.b16 %v552
    %v1469 = vunpack.c.h.b16 %v552
    %v1470 = vunpack.c.l.b16 %v553
    %v1471 = vunpack.c.h.b16 %v553
    %v1472 = vunpack.c.l.b16 %v554
    %v1473 = vunpack.c.h.b16 %v554
    %v1474 = vunpack.c.l.b16 %v555
    %v1475 = vunpack.c.h.b16 %v555
    %v1476 = vunpack.c.l.b16 %v556
    %v1477 = vunpack.c.h.b16 %v556
    %v1478 = vunpack.c.l.b16 %v557
    %v1479 = vunpack.c.h.b16 %v557
    %v1480 = vunpack.c.l.b16 %v558
    %v1481 = vunpack.c.h.b16 %v558
    %v1482 = vunpack.c.l.b16 %v559
    %v1483 = vunpack.c.h.b16 %v559
    %v1484 = vunpack.c.l.b16 %v560
    %v1485 = vunpack.c.h.b16 %v560
    %v1486 = vunpack.c.l.b16 %v561
    %v1487 = vunpack.c.h.b16 %v561
    %v1488 = vunpack.c.l.b16 %v562
    %v1489 = vunpack.c.h.b16 %v562
    %v1490 = vunpack.c.l.b16 %v563
    %v1491 = vunpack.c.h.b16 %v563
    %v1492 = vunpack.c.l.b16 %v564
    %v1493 = vunpack.c.h.b16 %v564
    %v1494 = vunpack.c.l.b16 %v565
    %v1495 = vunpack.c.h.b16 %v565
    %v1496 = vunpack.c.l.b16 %v566
    %v1497 = vunpack.c.h.b16 %v566
    %v1498 = vunpack.c.l.b16 %v567
    %v1499 = vunpack.c.h.b16 %v567
    %v1500 = vunpack.c.l.b16 %v568
    %v1501 = vunpack.c.h.b16 %v568
    %v1502 = vunpack.c.l.b16 %v569
    %v1503 = vunpack.c.h.b16 %v569
    %v1504 = vunpack.c.l.b16 %v570
    %v1505 = vunpack.c.h.b16 %v570
    %v1506 = vunpack.c.l.b16 %v571
    %v1507 = vunpack.c.h.b16 %v571
    %v1508 = vunpack.c.l.b16 %v572
    %v1509 = vunpack.c.h.b16 %v572
    %v1510 = vunpack.c.l.b16 %v573
    %v1511 = vunpack.c.h.b16 %v573
    %v1512 = vunpack.c.l.b16 %v574
    %v1513 = vunpack.c.h.b16 %v574
    %v1514 = vunpack.c.l.b16 %v575
    %v1515 = vunpack.c.h.b16 %v575
    %v1516 = vunpack.c.l.b16 %v576
    %v1517 = vunpack.c.h.b16 %v576
    %v1518 = vunpack.c.l.b16 %v577
    %v1519 = vunpack.c.h.b16 %v577
    %v1520 = vunpack.c.l.b16 %v578
    %v1521 = vunpack.c.h.b16 %v578
    %v1522 = vunpack.c.l.b16 %v579
    %v1523 = vunpack.c.h.b16 %v579
    %v1524 = vunpack.c.l.b16 %v580
    %v1525 = vunpack.c.h.b16 %v580
    %v1526 = vunpack.c.l.b16 %v581
    %v1527 = vunpack.c.h.b16 %v581
    %v1528 = vunpack.c.l.b16 %v582
    %v1529 = vunpack.c.h.b16 %v582
    %v1530 = vunpack.c.l.b16 %v583
    %v1531 = vunpack.c.h.b16 %v583
    %v1532 = vunpack.c.l.b16 %v584
    %v1533 = vunpack.c.h.b16 %v584
    %v1534 = vunpack.c.l.b16 %v585
    %v1535 = vunpack.c.h.b16 %v585
    %v1536 = vunpack.c.l.b16 %v586
    %v1537 = vunpack.c.h.b16 %v586
    %v1538 = vunpack.c.l.b16 %v587
    %v1539 = vunpack.c.h.b16 %v587
    %v1540 = vunpack.c.l.b16 %v588
    %v1541 = vunpack.c.h.b16 %v588
    %v1542 = vunpack.c.l.b16 %v589
    %v1543 = vunpack.c.h.b16 %v589
    %v1544 = vunpack.c.l.b16 %v590
    %v1545 = vunpack.c.h.b16 %v590
    %v1546 = vunpack.c.l.b16 %v591
    %v1547 = vunpack.c.h.b16 %v591
    %v1548 = vunpack.c.l.b16 %v592
    %v1549 = vunpack.c.h.b16 %v592
    %v1550 = vunpack.c.l.b16 %v593
    %v1551 = vunpack.c.h.b16 %v593
    %v1552 = vunpack.c.l.b16 %v594
    %v1553 = vunpack.c.h.b16 %v594
    %v1554 = vunpack.c.l.b16 %v595
    %v1555 = vunpack.c.h.b16 %v595
    %v1556 = vunpack.c.l.b16 %v596
    %v1557 = vunpack.c.h.b16 %v596
    %v1558 = vunpack.c.l.b16 %v597
    %v1559 = vunpack.c.h.b16 %v597
    %v1560 = vunpack.c.l.b16 %v598
    %v1561 = vunpack.c.h.b16 %v598
    %v1562 = vunpack.c.l.b16 %v599
    %v1563 = vunpack.c.h.b16 %v599
    %v1564 = vunpack.c.l.b16 %v600
    %v1565 = vunpack.c.h.b16 %v600
    %v1566 = vunpack.c.l.b16 %v601
    %v1567 = vunpack.c.h.b16 %v601
    %v1568 = vunpack.c.l.b16 %v602
    %v1569 = vunpack.c.h.b16 %v602
    %v1570 = vunpack.c.l.b16 %v603
    %v1571 = vunpack.c.h.b16 %v603
    %v1572 = vunpack.c.l.b16 %v604
    %v1573 = vunpack.c.h.b16 %v604
    %v1574 = vunpack.c.l.b16 %v605
    %v1575 = vunpack.c.h.b16 %v605
    %v1576 = vunpack.c.l.b16 %v606
    %v1577 = vunpack.c.h.b16 %v606
    %v1578 = vunpack.c.l.b16 %v607
    %v1579 = vunpack.c.h.b16 %v607
    %v1580 = vunpack.c.l.b16 %v608
    %v1581 = vunpack.c.h.b16 %v608
    %v1582 = vunpack.c.l.b16 %v609
    %v1583 = vunpack.c.h.b16 %v609
    %v1584 = vunpack.c.l.b16 %v610
    %v1585 = vunpack.c.h.b16 %v610
    %v1586 = vunpack.c.l.b16 %v611
    %v1587 = vunpack.c.h.b16 %v611
    %v1588 = vunpack.c.l.b16 %v612
    %v1589 = vunpack.c.h.b16 %v612
    %v1590 = vunpack.c.l.b16 %v613
    %v1591 = vunpack.c.h.b16 %v613
    %v1592 = vunpack.c.l.b16 %v614
    %v1593 = vunpack.c.h.b16 %v614
    %v1594 = vunpack.c.l.b16 %v615
    %v1595 = vunpack.c.h.b16 %v615
    %v1596 = vunpack.c.l.b16 %v616
    %v1597 = vunpack.c.h.b16 %v616
    %v1598 = vunpack.c.l.b16 %v617
    %v1599 = vunpack.c.h.b16 %v617
    %v1600 = vunpack.c.l.b16 %v618
    %v1601 = vunpack.c.h.b16 %v618
    %v1602 = vunpack.c.l.b16 %v619
    %v1603 = vunpack.c.h.b16 %v619
    %v1604 = vunpack.c.l.b16 %v620
    %v1605 = vunpack.c.h.b16 %v620
    %v1606 = vunpack.c.l.b16 %v621
    %v1607 = vunpack.c.h.b16 %v621
    %v1608 = vunpack.c.l.b16 %v622
    %v1609 = vunpack.c.h.b16 %v622
    %v1610 = vunpack.c.l.b16 %v623
    %v1611 = vunpack.c.h.b16 %v623
    %v1612 = vunpack.c.l.b16 %v624
    %v1613 = vunpack.c.h.b16 %v624
    %v1614 = vunpack.c.l.b16 %v625
    %v1615 = vunpack.c.h.b16 %v625
    %v1616 = vunpack.c.l.b16 %v626
    %v1617 = vunpack.c.h.b16 %v626
    %v1618 = vunpack.c.l.b16 %v627
    %v1619 = vunpack.c.h.b16 %v627
    %v1620 = vunpack.c.l.b16 %v628
    %v1621 = vunpack.c.h.b16 %v628
    %v1622 = vunpack.c.l.b16 %v629
    %v1623 = vunpack.c.h.b16 %v629
    %v1624 = vunpack.c.l.b16 %v630
    %v1625 = vunpack.c.h.b16 %v630
    %v1626 = vunpack.c.l.b16 %v631
    %v1627 = vunpack.c.h.b16 %v631
    %v1628 = vunpack.c.l.b16 %v632
    %v1629 = vunpack.c.h.b16 %v632
    %v1630 = vunpack.c.l.b16 %v633
    %v1631 = vunpack.c.h.b16 %v633
    %v1632 = vunpack.c.l.b16 %v634
    %v1633 = vunpack.c.h.b16 %v634
    %v1634 = vunpack.c.l.b16 %v635
    %v1635 = vunpack.c.h.b16 %v635
    %v1636 = vunpack.c.l.b16 %v636
    %v1637 = vunpack.c.h.b16 %v636
    %v1638 = vunpack.c.l.b16 %v637
    %v1639 = vunpack.c.h.b16 %v637
    %v1640 = vunpack.c.l.b16 %v638
    %v1641 = vunpack.c.h.b16 %v638
    %v1642 = vunpack.c.l.b16 %v639
    %v1643 = vunpack.c.h.b16 %v639
    %v1644 = vunpack.c.l.b16 %v640
    %v1645 = vunpack.c.h.b16 %v640
    %v1646 = vunpack.c.l.b16 %v641
    %v1647 = vunpack.c.h.b16 %v641
    %v1648 = vunpack.c.l.b16 %v642
    %v1649 = vunpack.c.h.b16 %v642
    %v1650 = vunpack.c.l.b16 %v643
    %v1651 = vunpack.c.h.b16 %v643
    %v1652 = vunpack.c.l.b16 %v644
    %v1653 = vunpack.c.h.b16 %v644
    %v1654 = vunpack.c.l.b16 %v645
    %v1655 = vunpack.c.h.b16 %v645
    %v1656 = vunpack.c.l.b16 %v646
    %v1657 = vunpack.c.h.b16 %v646
    %v1658 = vunpack.c.l.b16 %v647
    %v1659 = vunpack.c.h.b16 %v647
    %v1660 = vunpack.c.l.b16 %v648
    %v1661 = vunpack.c.h.b16 %v648
    %v1662 = vunpack.c.l.b16 %v649
    %v1663 = vunpack.c.h.b16 %v649
    %v1664 = vunpack.c.l.b16 %v650
    %v1665 = vunpack.c.h.b16 %v650
    %v1666 = vunpack.c.l.b16 %v651
    %v1667 = vunpack.c.h.b16 %v651
    %v1668 = vunpack.c.l.b16 %v652
    %v1669 = vunpack.c.h.b16 %v652
    %v1670 = vunpack.c.l.b16 %v653
    %v1671 = vunpack.c.h.b16 %v653
    %v1672 = vunpack.c.l.b16 %v654
    %v1673 = vunpack.c.h.b16 %v654
    %v1674 = vunpack.c.l.b16 %v655
    %v1675 = vunpack.c.h.b16 %v655
    %v1676 = vunpack.c.l.b16 %v656
    %v1677 = vunpack.c.h.b16 %v656
    %v1678 = vunpack.c.l.b16 %v657
    %v1679 = vunpack.c.h.b16 %v657
    %v1680 = vunpack.c.l.b16 %v658
    %v1681 = vunpack.c.h.b16 %v658
    %v1682 = vunpack.c.l.b16 %v659
    %v1683 = vunpack.c.h.b16 %v659
    %v1684 = vunpack.c.l.b16 %v660
    %v1685 = vunpack.c.h.b16 %v660
    %v1686 = vunpack.c.l.b16 %v661
    %v1687 = vunpack.c.h.b16 %v661
    %v1688 = vunpack.c.l.b16 %v662
    %v1689 = vunpack.c.h.b16 %v662
    %v1690 = vunpack.c.l.b16 %v663
    %v1691 = vunpack.c.h.b16 %v663
    %v1692 = vunpack.c.l.b16 %v664
    %v1693 = vunpack.c.h.b16 %v664
    %v1694 = vunpack.c.l.b16 %v665
    %v1695 = vunpack.c.h.b16 %v665
    %v1696 = vunpack.c.l.b16 %v666
    %v1697 = vunpack.c.h.b16 %v666
    %v1698 = vunpack.c.l.b16 %v667
    %v1699 = vunpack.c.h.b16 %v667
    %v1700 = vunpack.c.l.b16 %v668
    %v1701 = vunpack.c.h.b16 %v668
    %v1702 = vunpack.c.l.b16 %v669
    %v1703 = vunpack.c.h.b16 %v669
    %v1704 = vunpack.c.l.b16 %v670
    %v1705 = vunpack.c.h.b16 %v670
    %v1706 = vunpack.c.l.b16 %v671
    %v1707 = vunpack.c.h.b16 %v671
    %v1708 = vunpack.c.l.b16 %v672
    %v1709 = vunpack.c.h.b16 %v672
    %v1710 = vunpack.c.l.b16 %v673
    %v1711 = vunpack.c.h.b16 %v673
    %v1712 = vunpack.c.l.b16 %v674
    %v1713 = vunpack.c.h.b16 %v674
    %v1714 = vunpack.c.l.b16 %v675
    %v1715 = vunpack.c.h.b16 %v675
    %v1716 = vunpack.c.l.b16 %v676
    %v1717 = vunpack.c.h.b16 %v676
    %v1718 = vunpack.c.l.b16 %v677
    %v1719 = vunpack.c.h.b16 %v677
    %v1720 = vunpack.c.l.b16 %v678
    %v1721 = vunpack.c.h.b16 %v678
    %v1722 = vunpack.c.l.b16 %v679
    %v1723 = vunpack.c.h.b16 %v679
    %v1724 = vunpack.c.l.b16 %v680
    %v1725 = vunpack.c.h.b16 %v680
    %v1726 = vunpack.c.l.b16 %v681
    %v1727 = vunpack.c.h.b16 %v681
    %v1728 = vunpack.c.l.b16 %v682
    %v1729 = vunpack.c.h.b16 %v682
    %v1730 = vunpack.c.l.b16 %v683
    %v1731 = vunpack.c.h.b16 %v683
    %v1732 = vunpack.c.l.b16 %v684
    %v1733 = vunpack.c.h.b16 %v684
    %v1734 = vunpack.c.l.b16 %v685
    %v1735 = vunpack.c.h.b16 %v685
    %v1736 = vunpack.c.l.b16 %v686
    %v1737 = vunpack.c.h.b16 %v686
    %v1738 = vunpack.c.l.b16 %v687
    %v1739 = vunpack.c.h.b16 %v687
    %v1740 = vunpack.c.l.b16 %v688
    %v1741 = vunpack.c.h.b16 %v688
    %v1742 = vunpack.c.l.b16 %v689
    %v1743 = vunpack.c.h.b16 %v689
    %v1744 = vunpack.c.l.b16 %v690
    %v1745 = vunpack.c.h.b16 %v690
    %v1746 = vunpack.c.l.b16 %v691
    %v1747 = vunpack.c.h.b16 %v691
    %v1748 = vunpack.c.l.b16 %v692
    %v1749 = vunpack.c.h.b16 %v692
    %v1750 = vunpack.c.l.b16 %v693
    %v1751 = vunpack.c.h.b16 %v693
    %v1752 = vunpack.c.l.b16 %v694
    %v1753 = vunpack.c.h.b16 %v694
    %v1754 = vunpack.c.l.b16 %v695
    %v1755 = vunpack.c.h.b16 %v695
    %v1756 = vunpack.c.l.b16 %v696
    %v1757 = vunpack.c.h.b16 %v696
    %v1758 = vunpack.c.l.b16 %v697
    %v1759 = vunpack.c.h.b16 %v697
    %v1760 = vunpack.c.l.b16 %v698
    %v1761 = vunpack.c.h.b16 %v698
    %v1762 = vunpack.c.l.b16 %v699
    %v1763 = vunpack.c.h.b16 %v699
    %v1764 = vunpack.c.l.b16 %v700
    %v1765 = vunpack.c.h.b16 %v700
    %v1766 = vunpack.c.l.b16 %v701
    %v1767 = vunpack.c.h.b16 %v701
    %v1768 = vunpack.c.l.b16 %v702
    %v1769 = vunpack.c.h.b16 %v702
    %v1770 = vunpack.c.l.b16 %v703
    %v1771 = vunpack.c.h.b16 %v703
    %v1772 = vunpack.c.l.b16 %v704
    %v1773 = vunpack.c.h.b16 %v704
    %v1774 = vunpack.c.l.b16 %v705
    %v1775 = vunpack.c.h.b16 %v705
    %v1776 = vunpack.c.l.b16 %v706
    %v1777 = vunpack.c.h.b16 %v706
    %v1778 = vunpack.c.l.b16 %v707
    %v1779 = vunpack.c.h.b16 %v707
    %v1780 = vunpack.c.l.b16 %v708
    %v1781 = vunpack.c.h.b16 %v708
    %v1782 = vunpack.c.l.b16 %v709
    %v1783 = vunpack.c.h.b16 %v709
    %v1784 = vunpack.c.l.b16 %v710
    %v1785 = vunpack.c.h.b16 %v710
    %v1786 = vunpack.c.l.b16 %v711
    %v1787 = vunpack.c.h.b16 %v711
    %v1788 = vunpack.c.l.b16 %v712
    %v1789 = vunpack.c.h.b16 %v712
    %v1790 = vunpack.c.l.b16 %v713
    %v1791 = vunpack.c.h.b16 %v713
    %v1792 = vunpack.c.l.b16 %v714
    %v1793 = vunpack.c.h.b16 %v714
    %v1794 = vunpack.c.l.b16 %v715
    %v1795 = vunpack.c.h.b16 %v715
    %v1796 = vunpack.c.l.b16 %v716
    %v1797 = vunpack.c.h.b16 %v716
    %v1798 = vunpack.c.l.b16 %v717
    %v1799 = vunpack.c.h.b16 %v717
    %v1800 = vunpack.c.l.b16 %v718
    %v1801 = vunpack.c.h.b16 %v718
    %v1802 = vunpack.c.l.b16 %v719
    %v1803 = vunpack.c.h.b16 %v719
    %v1804 = vunpack.c.l.b16 %v720
    %v1805 = vunpack.c.h.b16 %v720
    %v1806 = vunpack.c.l.b16 %v721
    %v1807 = vunpack.c.h.b16 %v721
    %v1808 = vunpack.c.l.b16 %v722
    %v1809 = vunpack.c.h.b16 %v722
    %v1810 = vunpack.c.l.b16 %v723
    %v1811 = vunpack.c.h.b16 %v723
    %v1812 = vunpack.c.l.b16 %v724
    %v1813 = vunpack.c.h.b16 %v724
    %v1814 = vunpack.c.l.b16 %v725
    %v1815 = vunpack.c.h.b16 %v725
    %v1816 = vunpack.c.l.b16 %v726
    %v1817 = vunpack.c.h.b16 %v726
    %v1818 = vunpack.c.l.b16 %v727
    %v1819 = vunpack.c.h.b16 %v727
    %v1820 = vunpack.c.l.b16 %v728
    %v1821 = vunpack.c.h.b16 %v728
    %v1822 = vunpack.c.l.b16 %v729
    %v1823 = vunpack.c.h.b16 %v729
    %v1824 = vunpack.c.l.b16 %v730
    %v1825 = vunpack.c.h.b16 %v730
    %v1826 = vunpack.c.l.b16 %v731
    %v1827 = vunpack.c.h.b16 %v731
    %v1828 = vunpack.c.l.b16 %v732
    %v1829 = vunpack.c.h.b16 %v732
    %v1830 = vunpack.c.l.b16 %v733
    %v1831 = vunpack.c.h.b16 %v733
    %v1832 = vunpack.c.l.b16 %v734
    %v1833 = vunpack.c.h.b16 %v734
    %v1834 = vunpack.c.l.b16 %v735
    %v1835 = vunpack.c.h.b16 %v735
    %v1836 = vunpack.c.l.b16 %v736
    %v1837 = vunpack.c.h.b16 %v736
    %v1838 = vunpack.c.l.b16 %v737
    %v1839 = vunpack.c.h.b16 %v737
    %v1840 = vunpack.c.l.b16 %v738
    %v1841 = vunpack.c.h.b16 %v738
    %v1842 = vunpack.c.l.b16 %v739
    %v1843 = vunpack.c.h.b16 %v739
    %v1844 = vunpack.c.l.b16 %v740
    %v1845 = vunpack.c.h.b16 %v740
    %v1846 = vunpack.c.l.b16 %v741
    %v1847 = vunpack.c.h.b16 %v741
    %v1848 = vunpack.c.l.b16 %v742
    %v1849 = vunpack.c.h.b16 %v742
    %v1850 = vunpack.c.l.b16 %v743
    %v1851 = vunpack.c.h.b16 %v743
    %v1852 = vunpack.c.l.b16 %v744
    %v1853 = vunpack.c.h.b16 %v744
    %v1854 = vunpack.c.l.b16 %v745
    %v1855 = vunpack.c.h.b16 %v745
    %v1856 = vunpack.c.l.b16 %v746
    %v1857 = vunpack.c.h.b16 %v746
    %v1858 = vunpack.c.l.b16 %v747
    %v1859 = vunpack.c.h.b16 %v747
    %v1860 = vunpack.c.l.b16 %v748
    %v1861 = vunpack.c.h.b16 %v748
    %v1862 = vunpack.c.l.b16 %v749
    %v1863 = vunpack.c.h.b16 %v749
    %v1864 = vunpack.c.l.b16 %v750
    %v1865 = vunpack.c.h.b16 %v750
    %v1866 = vunpack.c.l.b16 %v751
    %v1867 = vunpack.c.h.b16 %v751
    %v1868 = vunpack.c.l.b16 %v752
    %v1869 = vunpack.c.h.b16 %v752
    %v1870 = vunpack.c.l.b16 %v753
    %v1871 = vunpack.c.h.b16 %v753
    %v1872 = vunpack.c.l.b16 %v754
    %v1873 = vunpack.c.h.b16 %v754
    %v1874 = vunpack.c.l.b16 %v755
    %v1875 = vunpack.c.h.b16 %v755
    %v1876 = vunpack.c.l.b16 %v756
    %v1877 = vunpack.c.h.b16 %v756
    %v1878 = vunpack.c.l.b16 %v757
    %v1879 = vunpack.c.h.b16 %v757
    %v1880 = vunpack.c.l.b16 %v758
    %v1881 = vunpack.c.h.b16 %v758
    %v1882 = vunpack.c.l.b16 %v759
    %v1883 = vunpack.c.h.b16 %v759
    %v1884 = vunpack.c.l.b16 %v760
    %v1885 = vunpack.c.h.b16 %v760
    %v1886 = vunpack.c.l.b16 %v761
    %v1887 = vunpack.c.h.b16 %v761
    %v1888 = vunpack.c.l.b16 %v762
    %v1889 = vunpack.c.h.b16 %v762
    %v1890 = vunpack.c.l.b16 %v763
    %v1891 = vunpack.c.h.b16 %v763
    %v1892 = vunpack.c.l.b16 %v764
    %v1893 = vunpack.c.h.b16 %v764
    %v1894 = vunpack.c.l.b16 %v765
    %v1895 = vunpack.c.h.b16 %v765
    %v1896 = vunpack.c.l.b16 %v766
    %v1897 = vunpack.c.h.b16 %v766
    %v1898 = vunpack.c.l.b16 %v767
    %v1899 = vunpack.c.h.b16 %v767
    %v1900 = vunpack.c.l.b16 %v768
    %v1901 = vunpack.c.h.b16 %v768
    %v1902 = vunpack.c.l.b16 %v769
    %v1903 = vunpack.c.h.b16 %v769
    %v1904 = vunpack.c.l.b16 %v770
    %v1905 = vunpack.c.h.b16 %v770
    %v1906 = vunpack.c.l.b16 %v771
    %v1907 = vunpack.c.h.b16 %v771
    %v1908 = vunpack.c.l.b16 %v772
    %v1909 = vunpack.c.h.b16 %v772
    %v1910 = vunpack.c.l.b16 %v773
    %v1911 = vunpack.c.h.b16 %v773
    %v1912 = vunpack.c.l.b16 %v774
    %v1913 = vunpack.c.h.b16 %v774
    %v1914 = vunpack.c.l.b16 %v775
    %v1915 = vunpack.c.h.b16 %v775
    %v1916 = vunpack.c.l.b16 %v776
    %v1917 = vunpack.c.h.b16 %v776
    %v1918 = vunpack.c.l.b16 %v777
    %v1919 = vunpack.c.h.b16 %v777
    %v1920 = vunpack.c.l.b16 %v778
    %v1921 = vunpack.c.h.b16 %v778
    %v1922 = vunpack.c.l.b16 %v779
    %v1923 = vunpack.c.h.b16 %v779
    %v1924 = vunpack.c.l.b16 %v780
    %v1925 = vunpack.c.h.b16 %v780
    %v1926 = vunpack.c.l.b16 %v781
    %v1927 = vunpack.c.h.b16 %v781
    %v1928 = vunpack.c.l.b16 %v782
    %v1929 = vunpack.c.h.b16 %v782
    %v1930 = vunpack.c.l.b16 %v783
    %v1931 = vunpack.c.h.b16 %v783
    %v1932 = vunpack.c.l.b16 %v784
    %v1933 = vunpack.c.h.b16 %v784
    %v1934 = vunpack.c.l.b16 %v785
    %v1935 = vunpack.c.h.b16 %v785
    %v1936 = vunpack.c.l.b16 %v786
    %v1937 = vunpack.c.h.b16 %v786
    %v1938 = vunpack.c.l.b16 %v787
    %v1939 = vunpack.c.h.b16 %v787
    %v1940 = vunpack.c.l.b16 %v788
    %v1941 = vunpack.c.h.b16 %v788
    %v1942 = vunpack.c.l.b16 %v789
    %v1943 = vunpack.c.h.b16 %v789
    %v1944 = vunpack.c.l.b16 %v790
    %v1945 = vunpack.c.h.b16 %v790
    %v1946 = vunpack.c.l.b16 %v791
    %v1947 = vunpack.c.h.b16 %v791
    %v1948 = vunpack.c.l.b16 %v792
    %v1949 = vunpack.c.h.b16 %v792
    %v1950 = vunpack.c.l.b16 %v793
    %v1951 = vunpack.c.h.b16 %v793
    %v1952 = vunpack.c.l.b16 %v794
    %v1953 = vunpack.c.h.b16 %v794
    %v1954 = vunpack.c.l.b16 %v795
    %v1955 = vunpack.c.h.b16 %v795
    %v1956 = vunpack.c.l.b16 %v796
    %v1957 = vunpack.c.h.b16 %v796
    %v1958 = vunpack.c.l.b16 %v797
    %v1959 = vunpack.c.h.b16 %v797
    %v1960 = vunpack.c.l.b16 %v798
    %v1961 = vunpack.c.h.b16 %v798
    %v1962 = vunpack.c.l.b16 %v799
    %v1963 = vunpack.c.h.b16 %v799
    %v1964 = vpack.c.b16 %v1198, %v1196
    %v1965 = vpack.c.b16 %v1199, %v1197
    %v1966 = vpack.c.b16 %v1202, %v1200
    %v1967 = vpack.c.b16 %v1203, %v1201
    %v1968 = vpack.c.b16 %v1206, %v1204
    %v1969 = vpack.c.b16 %v1207, %v1205
    %v1970 = vpack.c.b16 %v1210, %v1208
    %v1971 = vpack.c.b16 %v1211, %v1209
    %v1972 = vpack.c.b16 %v1214, %v1212
    %v1973 = vpack.c.b16 %v1215, %v1213
    %v1974 = vpack.c.b16 %v1218, %v1216
    %v1975 = vpack.c.b16 %v1219, %v1217
    %v1976 = vpack.c.b16 %v1222, %v1220
    %v1977 = vpack.c.b16 %v1223, %v1221
    %v1978 = vpack.c.b16 %v1226, %v1224
    %v1979 = vpack.c.b16 %v1227, %v1225
    %v1980 = vpack.c.b16 %v1230, %v1228
    %v1981 = vpack.c.b16 %v1231, %v1229
    %v1982 = vpack.c.b16 %v1234, %v1232
    %v1983 = vpack.c.b16 %v1235, %v1233
    %v1984 = vpack.c.b16 %v1238, %v1236
    %v1985 = vpack.c.b16 %v1239, %v1237
    %v1986 = vpack.c.b16 %v1242, %v1240
    %v1987 = vpack.c.b16 %v1243, %v1241
    %v1988 = vpack.c.b16 %v1246, %v1244
    %v1989 = vpack.c.b16 %v1247, %v1245
    %v1990 = vpack.c.b16 %v1250, %v1248
    %v1991 = vpack.c.b16 %v1251, %v1249
    %v1992 = vpack.c.b16 %v1254, %v1252
    %v1993 = vpack.c.b16 %v1255, %v1253
    %v1994 = vpack.c.b16 %v1258, %v1256
    %v1995 = vpack.c.b16 %v1259, %v1257
    %v1996 = vpack.c.b16 %v1262, %v1260
    %v1997 = vpack.c.b16 %v1263, %v1261
    %v1998 = vpack.c.b16 %v1266, %v1264
    %v1999 = vpack.c.b16 %v1267, %v1265
    %v2000 = vpack.c.b16 %v1270, %v1268
    %v2001 = vpack.c.b16 %v1271, %v1269
    %v2002 = vpack.c.b16 %v1274, %v1272
    %v2003 = vpack.c.b16 %v1275, %v1273
    %v2004 = vpack.c.b16 %v1278, %v1276
    %v2005 = vpack.c.b16 %v1279, %v1277
    %v2006 = vpack.c.b16 %v1282, %v1280
    %v2007 = vpack.c.b16 %v1283, %v1281
    %v2008 = vpack.c.b16 %v1286, %v1284
    %v2009 = vpack.c.b16 %v1287, %v1285
    %v2010 = vpack.c.b16 %v1290, %v1288
    %v2011 = vpack.c.b16 %v1291, %v1289
    %v2012 = vpack.c.b16 %v1294, %v1292
    %v2013 = vpack.c.b16 %v1295, %v1293
    %v2014 = vpack.c.b16 %v1298, %v1296
    %v2015 = vpack.c.b16 %v1299, %v1297
    %v2016 = vpack.c.b16 %v1302, %v1300
    %v2017 = vpack.c.b16 %v1303, %v1301
    %v2018 = vpack.c.b16 %v1306, %v1304
    %v2019 = vpack.c.b16 %v1307, %v1305
    %v2020 = vpack.c.b16 %v1310, %v1308
    %v2021 = vpack.c.b16 %v1311, %v1309
    %v2022 = vpack.c.b16 %v1314, %v1312
    %v2023 = vpack.c.b16 %v1315, %v1313
    %v2024 = vpack.c.b16 %v1318, %v1316
    %v2025 = vpack.c.b16 %v1319, %v1317
    %v2026 = vpack.c.b16 %v1322, %v1320
    %v2027 = vpack.c.b16 %v1323, %v1321
    %v2028 = vpack.c.b16 %v1326, %v1324
    %v2029 = vpack.c.b16 %v1327, %v1325
    %v2030 = vpack.c.b16 %v1330, %v1328
    %v2031 = vpack.c.b16 %v1331, %v1329
    %v2032 = vpack.c.b16 %v1334, %v1332
    %v2033 = vpack.c.b16 %v1335, %v1333
    %v2034 = vpack.c.b16 %v1338, %v1336
    %v2035 = vpack.c.b16 %v1339, %v1337
    %v2036 = vpack.c.b16 %v1342, %v1340
    %v2037 = vpack.c.b16 %v1343, %v1341
    %v2038 = vpack.c.b16 %v1346, %v1344
    %v2039 = vpack.c.b16 %v1347, %v1345
    %v2040 = vpack.c.b16 %v1350, %v1348
    %v2041 = vpack.c.b16 %v1351, %v1349
    %v2042 = vpack.c.b16 %v1354, %v1352
    %v2043 = vpack.c.b16 %v1355, %v1353
    %v2044 = vpack.c.b16 %v1358, %v1356
    %v2045 = vpack.c.b16 %v1359, %v1357
    %v2046 = vpack.c.b16 %v1362, %v1360
    %v2047 = vpack.c.b16 %v1363, %v1361
    %v2048 = vpack.c.b16 %v1366, %v1364
    %v2049 = vpack.c.b16 %v1367, %v1365
    %v2050 = vpack.c.b16 %v1370, %v1368
    %v2051 = vpack.c.b16 %v1371, %v1369
    %v2052 = vpack.c.b16 %v1374, %v1372
    %v2053 = vpack.c.b16 %v1375, %v1373
    %v2054 = vpack.c.b16 %v1378, %v1376
    %v2055 = vpack.c.b16 %v1379, %v1377
    %v2056 = vpack.c.b16 %v1382, %v1380
    %v2057 = vpack.c.b16 %v1383, %v1381
    %v2058 = vpack.c.b16 %v1386, %v1384
    %v2059 = vpack.c.b16 %v1387, %v1385
    %v2060 = vpack.c.b16 %v1390, %v1388
    %v2061 = vpack.c.b16 %v1391, %v1389
    %v2062 = vpack.c.b16 %v1394, %v1392
    %v2063 = vpack.c.b16 %v1395, %v1393
    %v2064 = vpack.c.b16 %v1398, %v1396
    %v2065 = vpack.c.b16 %v1399, %v1397
    %v2066 = vpack.c.b16 %v1402, %v1400
    %v2067 = vpack.c.b16 %v1403, %v1401
    %v2068 = vpack.c.b16 %v1406, %v1404
    %v2069 = vpack.c.b16 %v1407, %v1405
    %v2070 = vpack.c.b16 %v1410, %v1408
    %v2071 = vpack.c.b16 %v1411, %v1409
    %v2072 = vpack.c.b16 %v1414, %v1412
    %v2073 = vpack.c.b16 %v1415, %v1413
    %v2074 = vpack.c.b16 %v1418, %v1416
    %v2075 = vpack.c.b16 %v1419, %v1417
    %v2076 = vpack.c.b16 %v1422, %v1420
    %v2077 = vpack.c.b16 %v1423, %v1421
    %v2078 = vpack.c.b16 %v1426, %v1424
    %v2079 = vpack.c.b16 %v1427, %v1425
    %v2080 = vpack.c.b16 %v1430, %v1428
    %v2081 = vpack.c.b16 %v1431, %v1429
    %v2082 = vpack.c.b16 %v1434, %v1432
    %v2083 = vpack.c.b16 %v1435, %v1433
    %v2084 = vpack.c.b16 %v1438, %v1436
    %v2085 = vpack.c.b16 %v1439, %v1437
    %v2086 = vpack.c.b16 %v1442, %v1440
    %v2087 = vpack.c.b16 %v1443, %v1441
    %v2088 = vpack.c.b16 %v1446, %v1444
    %v2089 = vpack.c.b16 %v1447, %v1445
    %v2090 = vpack.c.b16 %v1450, %v1448
    %v2091 = vpack.c.b16 %v1451, %v1449
    %v2092 = vpack.c.b16 %v1454, %v1452
    %v2093 = vpack.c.b16 %v1455, %v1453
    %v2094 = vpack.c.b16 %v1458, %v1456
    %v2095 = vpack.c.b16 %v1459, %v1457
    %v2096 = vpack.c.b16 %v1462, %v1460
    %v2097 = vpack.c.b16 %v1463, %v1461
    %v2098 = vpack.c.b16 %v1466, %v1464
    %v2099 = vpack.c.b16 %v1467, %v1465
    %v2100 = vpack.c.b16 %v1470, %v1468
    %v2101 = vpack.c.b16 %v1471, %v1469
    %v2102 = vpack.c.b16 %v1474, %v1472
    %v2103 = vpack.c.b16 %v1475, %v1473
    %v2104 = vpack.c.b16 %v1478, %v1476
    %v2105 = vpack.c.b16 %v1479, %v1477
    %v2106 = vpack.c.b16 %v1482, %v1480
    %v2107 = vpack.c.b16 %v1483, %v1481
    %v2108 = vpack.c.b16 %v1486, %v1484
    %v2109 = vpack.c.b16 %v1487, %v1485
    %v2110 = vpack.c.b16 %v1490, %v1488
    %v2111 = vpack.c.b16 %v1491, %v1489
    %v2112 = vpack.c.b16 %v1494, %v1492
    %v2113 = vpack.c.b16 %v1495, %v1493
    %v2114 = vpack.c.b16 %v1498, %v1496
    %v2115 = vpack.c.b16 %v1499, %v1497
    %v2116 = vpack.c.b16 %v1502, %v1500
    %v2117 = vpack.c.b16 %v1503, %v1501
    %v2118 = vpack.c.b16 %v1506, %v1504
    %v2119 = vpack.c.b16 %v1507, %v1505
    %v2120 = vpack.c.b16 %v1510, %v1508
    %v2121 = vpack.c.b16 %v1511, %v1509
    %v2122 = vpack.c.b16 %v1514, %v1512
    %v2123 = vpack.c.b16 %v1515, %v1513
    %v2124 = vpack.c.b16 %v1518, %v1516
    %v2125 = vpack.c.b16 %v1519, %v1517
    %v2126 = vpack.c.b16 %v1522, %v1520
    %v2127 = vpack.c.b16 %v1523, %v1521
    %v2128 = vpack.c.b16 %v1526, %v1524
    %v2129 = vpack.c.b16 %v1527, %v1525
    %v2130 = vpack.c.b16 %v1530, %v1528
    %v2131 = vpack.c.b16 %v1531, %v1529
    %v2132 = vpack.c.b16 %v1534, %v1532
    %v2133 = vpack.c.b16 %v1535, %v1533
    %v2134 = vpack.c.b16 %v1538, %v1536
    %v2135 = vpack.c.b16 %v1539, %v1537
    %v2136 = vpack.c.b16 %v1542, %v1540
    %v2137 = vpack.c.b16 %v1543, %v1541
    %v2138 = vpack.c.b16 %v1546, %v1544
    %v2139 = vpack.c.b16 %v1547, %v1545
    %v2140 = vpack.c.b16 %v1550, %v1548
    %v2141 = vpack.c.b16 %v1551, %v1549
    %v2142 = vpack.c.b16 %v1554, %v1552
    %v2143 = vpack.c.b16 %v1555, %v1553
    %v2144 = vpack.c.b16 %v1558, %v1556
    %v2145 = vpack.c.b16 %v1559, %v1557
    %v2146 = vpack.c.b16 %v1562, %v1560
    %v2147 = vpack.c.b16 %v1563, %v1561
    %v2148 = vpack.c.b16 %v1566, %v1564
    %v2149 = vpack.c.b16 %v1567, %v1565
    %v2150 = vpack.c.b16 %v1570, %v1568
    %v2151 = vpack.c.b16 %v1571, %v1569
    %v2152 = vpack.c.b16 %v1574, %v1572
    %v2153 = vpack.c.b16 %v1575, %v1573
    %v2154 = vpack.c.b16 %v1578, %v1576
    %v2155 = vpack.c.b16 %v1579, %v1577
    %v2156 = vpack.c.b16 %v1582, %v1580
    %v2157 = vpack.c.b16 %v1583, %v1581
    %v2158 = vpack.c.b16 %v1586, %v1584
    %v2159 = vpack.c.b16 %v1587, %v1585
    %v2160 = vpack.c.b16 %v1590, %v1588
    %v2161 = vpack.c.b16 %v1591, %v1589
    %v2162 = vpack.c.b16 %v1594, %v1592
    %v2163 = vpack.c.b16 %v1595, %v1593
    %v2164 = vpack.c.b16 %v1598, %v1596
    %v2165 = vpack.c.b16 %v1599, %v1597
    %v2166 = vpack.c.b16 %v1602, %v1600
    %v2167 = vpack.c.b16 %v1603, %v1601
    %v2168 = vpack.c.b16 %v1606, %v1604
    %v2169 = vpack.c.b16 %v1607, %v1605
    %v2170 = vpack.c.b16 %v1610, %v1608
    %v2171 = vpack.c.b16 %v1611, %v1609
    %v2172 = vpack.c.b16 %v1614, %v1612
    %v2173 = vpack.c.b16 %v1615, %v1613
    %v2174 = vpack.c.b16 %v1618, %v1616
    %v2175 = vpack.c.b16 %v1619, %v1617
    %v2176 = vpack.c.b16 %v1622, %v1620
    %v2177 = vpack.c.b16 %v1623, %v1621
    %v2178 = vpack.c.b16 %v1626, %v1624
    %v2179 = vpack.c.b16 %v1627, %v1625
    %v2180 = vpack.c.b16 %v1630, %v1628
    %v2181 = vpack.c.b16 %v1631, %v1629
    %v2182 = vpack.c.b16 %v1634, %v1632
    %v2183 = vpack.c.b16 %v1635, %v1633
    %v2184 = vpack.c.b16 %v1638, %v1636
    %v2185 = vpack.c.b16 %v1639, %v1637
    %v2186 = vpack.c.b16 %v1642, %v1640
    %v2187 = vpack.c.b16 %v1643, %v1641
    %v2188 = vpack.c.b16 %v1646, %v1644
    %v2189 = vpack.c.b16 %v1647, %v1645
    %v2190 = vpack.c.b16 %v1650, %v1648
    %v2191 = vpack.c.b16 %v1651, %v1649
    %v2192 = vpack.c.b16 %v1654, %v1652
    %v2193 = vpack.c.b16 %v1655, %v1653
    %v2194 = vpack.c.b16 %v1658, %v1656
    %v2195 = vpack.c.b16 %v1659, %v1657
    %v2196 = vpack.c.b16 %v1662, %v1660
    %v2197 = vpack.c.b16 %v1663, %v1661
    %v2198 = vpack.c.b16 %v1666, %v1664
    %v2199 = vpack.c.b16 %v1667, %v1665
    %v2200 = vpack.c.b16 %v1670, %v1668
    %v2201 = vpack.c.b16 %v1671, %v1669
    %v2202 = vpack.c.b16 %v1674, %v1672
    %v2203 = vpack.c.b16 %v1675, %v1673
    %v2204 = vpack.c.b16 %v1678, %v1676
    %v2205 = vpack.c.b16 %v1679, %v1677
    %v2206 = vpack.c.b16 %v1682, %v1680
    %v2207 = vpack.c.b16 %v1683, %v1681
    %v2208 = vpack.c.b16 %v1686, %v1684
    %v2209 = vpack.c.b16 %v1687, %v1685
    %v2210 = vpack.c.b16 %v1690, %v1688
    %v2211 = vpack.c.b16 %v1691, %v1689
    %v2212 = vpack.c.b16 %v1694, %v1692
    %v2213 = vpack.c.b16 %v1695, %v1693
    %v2214 = vpack.c.b16 %v1698, %v1696
    %v2215 = vpack.c.b16 %v1699, %v1697
    %v2216 = vpack.c.b16 %v1702, %v1700
    %v2217 = vpack.c.b16 %v1703, %v1701
    %v2218 = vpack.c.b16 %v1706, %v1704
    %v2219 = vpack.c.b16 %v1707, %v1705
    %v2220 = vpack.c.b16 %v1710, %v1708
    %v2221 = vpack.c.b16 %v1711, %v1709
    %v2222 = vpack.c.b16 %v1714, %v1712
    %v2223 = vpack.c.b16 %v1715, %v1713
    %v2224 = vpack.c.b16 %v1718, %v1716
    %v2225 = vpack.c.b16 %v1719, %v1717
    %v2226 = vpack.c.b16 %v1722, %v1720
    %v2227 = vpack.c.b16 %v1723, %v1721
    %v2228 = vpack.c.b16 %v1726, %v1724
    %v2229 = vpack.c.b16 %v1727, %v1725
    %v2230 = vpack.c.b16 %v1730, %v1728
    %v2231 = vpack.c.b16 %v1731, %v1729
    %v2232 = vpack.c.b16 %v1734, %v1732
    %v2233 = vpack.c.b16 %v1735, %v1733
    %v2234 = vpack.c.b16 %v1738, %v1736
    %v2235 = vpack.c.b16 %v1739, %v1737
    %v2236 = vpack.c.b16 %v1742, %v1740
    %v2237 = vpack.c.b16 %v1743, %v1741
    %v2238 = vpack.c.b16 %v1746, %v1744
    %v2239 = vpack.c.b16 %v1747, %v1745
    %v2240 = vpack.c.b16 %v1750, %v1748
    %v2241 = vpack.c.b16 %v1751, %v1749
    %v2242 = vpack.c.b16 %v1754, %v1752
    %v2243 = vpack.c.b16 %v1755, %v1753
    %v2244 = vpack.c.b16 %v1758, %v1756
    %v2245 = vpack.c.b16 %v1759, %v1757
    %v2246 = vpack.c.b16 %v1762, %v1760
    %v2247 = vpack.c.b16 %v1763, %v1761
    %v2248 = vpack.c.b16 %v1766, %v1764
    %v2249 = vpack.c.b16 %v1767, %v1765
    %v2250 = vpack.c.b16 %v1770, %v1768
    %v2251 = vpack.c.b16 %v1771, %v1769
    %v2252 = vpack.c.b16 %v1774, %v1772
    %v2253 = vpack.c.b16 %v1775, %v1773
    %v2254 = vpack.c.b16 %v1778, %v1776
    %v2255 = vpack.c.b16 %v1779, %v1777
    %v2256 = vpack.c.b16 %v1782, %v1780
    %v2257 = vpack.c.b16 %v1783, %v1781
    %v2258 = vpack.c.b16 %v1786, %v1784
    %v2259 = vpack.c.b16 %v1787, %v1785
    %v2260 = vpack.c.b16 %v1790, %v1788
    %v2261 = vpack.c.b16 %v1791, %v1789
    %v2262 = vpack.c.b16 %v1794, %v1792
    %v2263 = vpack.c.b16 %v1795, %v1793
    %v2264 = vpack.c.b16 %v1798, %v1796
    %v2265 = vpack.c.b16 %v1799, %v1797
    %v2266 = vpack.c.b16 %v1802, %v1800
    %v2267 = vpack.c.b16 %v1803, %v1801
    %v2268 = vpack.c.b16 %v1806, %v1804
    %v2269 = vpack.c.b16 %v1807, %v1805
    %v2270 = vpack.c.b16 %v1810, %v1808
    %v2271 = vpack.c.b16 %v1811, %v1809
    %v2272 = vpack.c.b16 %v1814, %v1812
    %v2273 = vpack.c.b16 %v1815, %v1813
    %v2274 = vpack.c.b16 %v1818, %v1816
    %v2275 = vpack.c.b16 %v1819, %v1817
    %v2276 = vpack.c.b16 %v1822, %v1820
    %v2277 = vpack.c.b16 %v1823, %v1821
    %v2278 = vpack.c.b16 %v1826, %v1824
    %v2279 = vpack.c.b16 %v1827, %v1825
    %v2280 = vpack.c.b16 %v1830, %v1828
    %v2281 = vpack.c.b16 %v1831, %v1829
    %v2282 = vpack.c.b16 %v1834, %v1832
    %v2283 = vpack.c.b16 %v1835, %v1833
    %v2284 = vpack.c.b16 %v1838, %v1836
    %v2285 = vpack.c.b16 %v1839, %v1837
    %v2286 = vpack.c.b16 %v1842, %v1840
    %v2287 = vpack.c.b16 %v1843, %v1841
    %v2288 = vpack.c.b16 %v1846, %v1844
    %v2289 = vpack.c.b16 %v1847, %v1845
    %v2290 = vpack.c.b16 %v1850, %v1848
    %v2291 = vpack.c.b16 %v1851, %v1849
    %v2292 = vpack.c.b16 %v1854, %v1852
    %v2293 = vpack.c.b16 %v1855, %v1853
    %v2294 = vpack.c.b16 %v1858, %v1856
    %v2295 = vpack.c.b16 %v1859, %v1857
    %v2296 = vpack.c.b16 %v1862, %v1860
    %v2297 = vpack.c.b16 %v1863, %v1861
    %v2298 = vpack.c.b16 %v1866, %v1864
    %v2299 = vpack.c.b16 %v1867, %v1865
    %v2300 = vpack.c.b16 %v1870, %v1868
    %v2301 = vpack.c.b16 %v1871, %v1869
    %v2302 = vpack.c.b16 %v1874, %v1872
    %v2303 = vpack.c.b16 %v1875, %v1873
    %v2304 = vpack.c.b16 %v1878, %v1876
    %v2305 = vpack.c.b16 %v1879, %v1877
    %v2306 = vpack.c.b16 %v1882, %v1880
    %v2307 = vpack.c.b16 %v1883, %v1881
    %v2308 = vpack.c.b16 %v1886, %v1884
    %v2309 = vpack.c.b16 %v1887, %v1885
    %v2310 = vpack.c.b16 %v1890, %v1888
    %v2311 = vpack.c.b16 %v1891, %v1889
    %v2312 = vpack.c.b16 %v1894, %v1892
    %v2313 = vpack.c.b16 %v1895, %v1893
    %v2314 = vpack.c.b16 %v1898, %v1896
    %v2315 = vpack.c.b16 %v1899, %v1897
    %v2316 = vpack.c.b16 %v1902, %v1900
    %v2317 = vpack.c.b16 %v1903, %v1901
    %v2318 = vpack.c.b16 %v1906, %v1904
    %v2319 = vpack.c.b16 %v1907, %v1905
    %v2320 = vpack.c.b16 %v1910, %v1908
    %v2321 = vpack.c.b16 %v1911, %v1909
    %v2322 = vpack.c.b16 %v1914, %v1912
    %v2323 = vpack.c.b16 %v1915, %v1913
    %v2324 = vpack.c.b16 %v1918, %v1916
    %v2325 = vpack.c.b16 %v1919, %v1917
    %v2326 = vpack.c.b16 %v1922, %v1920
    %v2327 = vpack.c.b16 %v1923, %v1921
    %v2328 = vpack.c.b16 %v1926, %v1924
    %v2329 = vpack.c.b16 %v1927, %v1925
    %v2330 = vpack.c.b16 %v1930, %v1928
    %v2331 = vpack.c.b16 %v1931, %v1929
    %v2332 = vpack.c.b16 %v1934, %v1932
    %v2333 = vpack.c.b16 %v1935, %v1933
    %v2334 = vpack.c.b16 %v1938, %v1936
    %v2335 = vpack.c.b16 %v1939, %v1937
    %v2336 = vpack.c.b16 %v1942, %v1940
    %v2337 = vpack.c.b16 %v1943, %v1941
    %v2338 = vpack.c.b16 %v1946, %v1944
    %v2339 = vpack.c.b16 %v1947, %v1945
    %v2340 = vpack.c.b16 %v1950, %v1948
    %v2341 = vpack.c.b16 %v1951, %v1949
    %v2342 = vpack.c.b16 %v1954, %v1952
    %v2343 = vpack.c.b16 %v1955, %v1953
    %v2344 = vpack.c.b16 %v1958, %v1956
    %v2345 = vpack.c.b16 %v1959, %v1957
    %v2346 = vpack.c.b16 %v1962, %v1960
    %v2347 = vpack.c.b16 %v1963, %v1961
    %2732 = vmatprep.subr.bf16.mxu0 %v1979
    %2733 = vmatpush1.bf16.msra.mxu0 %v1978
    %2734 = vmatprep.subr.bf16.mxu0 %v1977
    %2735 = vmatpush1.bf16.msra.mxu0 %v1976
    %2736 = vmatprep.subr.bf16.mxu0 %v1975
    %2737 = vmatpush1.bf16.msra.mxu0 %v1974
    %2738 = vmatprep.subr.bf16.mxu0 %v1973
    %2739 = vmatpush1.bf16.msra.mxu0 %v1972
    %2740 = vmatprep.subr.bf16.mxu0 %v1971
    %2741 = vmatpush1.bf16.msra.mxu0 %v1970
    %2742 = vmatprep.subr.bf16.mxu0 %v1969
    %2743 = vmatpush1.bf16.msra.mxu0 %v1968
    %2744 = vmatprep.subr.bf16.mxu0 %v1967
    %2745 = vmatpush1.bf16.msra.mxu0 %v1966
    %2746 = vmatprep.subr.bf16.mxu0 %v1965
    %2747 = vmatpush1.bf16.msra.mxu0 %v1964
    %2748 = vmatprep.subr.bf16.mxu0 %v1995
    %2749 = vmatpush2.bf16.msra.mxu0 %v1994
    %2750 = vmatprep.subr.bf16.mxu0 %v1993
    %2751 = vmatpush2.bf16.msra.mxu0 %v1992
    %2752 = vmatprep.subr.bf16.mxu0 %v1991
    %2753 = vmatpush2.bf16.msra.mxu0 %v1990
    %2754 = vmatprep.subr.bf16.mxu0 %v1989
    %2755 = vmatpush2.bf16.msra.mxu0 %v1988
    %2756 = vmatprep.subr.bf16.mxu0 %v1987
    %2757 = vmatpush2.bf16.msra.mxu0 %v1986
    %2758 = vmatprep.subr.bf16.mxu0 %v1985
    %2759 = vmatpush2.bf16.msra.mxu0 %v1984
    %2760 = vmatprep.subr.bf16.mxu0 %v1983
    %2761 = vmatpush2.bf16.msra.mxu0 %v1982
    %2762 = vmatprep.subr.bf16.mxu0 %v1981
    %2763 = vmatpush2.bf16.msra.mxu0 %v1980
    %2764 = vmatprep.mubr.bf16.mxu0 %v393
    %2765 = vmatmul.mubr.bf16.gmra.mxu0 %v392
    %v2766 = vpop.f32.mrf.mxu0
    %v2767 = vadd.f32 %v805, %v2766
    %v2768 = vpop.f32.mrf.mxu0
    %v2769 = vadd.f32 %v809, %v2768
    %v2770 = vpop.f32.mrf.mxu0
    %v2771 = vpop.f32.mrf.mxu0
    %2772 = vdwg.mxu0
    %2773 = vmatprep.subr.bf16.mxu0 %v2011
    %2774 = vmatpush1.bf16.msra.mxu0 %v2010
    %2775 = vmatprep.subr.bf16.mxu0 %v2009
    %2776 = vmatpush1.bf16.msra.mxu0 %v2008
    %2777 = vmatprep.subr.bf16.mxu0 %v2007
    %2778 = vmatpush1.bf16.msra.mxu0 %v2006
    %2779 = vmatprep.subr.bf16.mxu0 %v2005
    %2780 = vmatpush1.bf16.msra.mxu0 %v2004
    %2781 = vmatprep.subr.bf16.mxu0 %v2003
    %2782 = vmatpush1.bf16.msra.mxu0 %v2002
    %2783 = vmatprep.subr.bf16.mxu0 %v2001
    %2784 = vmatpush1.bf16.msra.mxu0 %v2000
    %2785 = vmatprep.subr.bf16.mxu0 %v1999
    %2786 = vmatpush1.bf16.msra.mxu0 %v1998
    %2787 = vmatprep.subr.bf16.mxu0 %v1997
    %2788 = vmatpush1.bf16.msra.mxu0 %v1996
    %2789 = vmatprep.subr.bf16.mxu0 %v2027
    %2790 = vmatpush2.bf16.msra.mxu0 %v2026
    %2791 = vmatprep.subr.bf16.mxu0 %v2025
    %2792 = vmatpush2.bf16.msra.mxu0 %v2024
    %2793 = vmatprep.subr.bf16.mxu0 %v2023
    %2794 = vmatpush2.bf16.msra.mxu0 %v2022
    %2795 = vmatprep.subr.bf16.mxu0 %v2021
    %2796 = vmatpush2.bf16.msra.mxu0 %v2020
    %2797 = vmatprep.subr.bf16.mxu0 %v2019
    %2798 = vmatpush2.bf16.msra.mxu0 %v2018
    %2799 = vmatprep.subr.bf16.mxu0 %v2017
    %2800 = vmatpush2.bf16.msra.mxu0 %v2016
    %2801 = vmatprep.subr.bf16.mxu0 %v2015
    %2802 = vmatpush2.bf16.msra.mxu0 %v2014
    %2803 = vmatprep.subr.bf16.mxu0 %v2013
    %2804 = vmatpush2.bf16.msra.mxu0 %v2012
    %2805 = vmatprep.mubr.bf16.mxu0 %v395
    %2806 = vmatmul.mubr.bf16.gmra.mxu0 %v394
    %v2807 = vpop.f32.mrf.mxu0
    %v2808 = vadd.f32 %v2767, %v2807
    %v2809 = vpop.f32.mrf.mxu0
    %v2810 = vadd.f32 %v2769, %v2809
    %v2811 = vpop.f32.mrf.mxu0
    %v2812 = vpop.f32.mrf.mxu0
    %2813 = vdwg.mxu0
    %2814 = vmatprep.subr.bf16.mxu0 %v2043
    %2815 = vmatpush1.bf16.msra.mxu0 %v2042
    %2816 = vmatprep.subr.bf16.mxu0 %v2041
    %2817 = vmatpush1.bf16.msra.mxu0 %v2040
    %2818 = vmatprep.subr.bf16.mxu0 %v2039
    %2819 = vmatpush1.bf16.msra.mxu0 %v2038
    %2820 = vmatprep.subr.bf16.mxu0 %v2037
    %2821 = vmatpush1.bf16.msra.mxu0 %v2036
    %2822 = vmatprep.subr.bf16.mxu0 %v2035
    %2823 = vmatpush1.bf16.msra.mxu0 %v2034
    %2824 = vmatprep.subr.bf16.mxu0 %v2033
    %2825 = vmatpush1.bf16.msra.mxu0 %v2032
    %2826 = vmatprep.subr.bf16.mxu0 %v2031
    %2827 = vmatpush1.bf16.msra.mxu0 %v2030
    %2828 = vmatprep.subr.bf16.mxu0 %v2029
    %2829 = vmatpush1.bf16.msra.mxu0 %v2028
    %2830 = vmatprep.subr.bf16.mxu0 %v2059
    %2831 = vmatpush2.bf16.msra.mxu0 %v2058
    %2832 = vmatprep.subr.bf16.mxu0 %v2057
    %2833 = vmatpush2.bf16.msra.mxu0 %v2056
    %2834 = vmatprep.subr.bf16.mxu0 %v2055
    %2835 = vmatpush2.bf16.msra.mxu0 %v2054
    %2836 = vmatprep.subr.bf16.mxu0 %v2053
    %2837 = vmatpush2.bf16.msra.mxu0 %v2052
    %2838 = vmatprep.subr.bf16.mxu0 %v2051
    %2839 = vmatpush2.bf16.msra.mxu0 %v2050
    %2840 = vmatprep.subr.bf16.mxu0 %v2049
    %2841 = vmatpush2.bf16.msra.mxu0 %v2048
    %2842 = vmatprep.subr.bf16.mxu0 %v2047
    %2843 = vmatpush2.bf16.msra.mxu0 %v2046
    %2844 = vmatprep.subr.bf16.mxu0 %v2045
    %2845 = vmatpush2.bf16.msra.mxu0 %v2044
    %2846 = vmatprep.mubr.bf16.mxu0 %v397
    %2847 = vmatmul.mubr.bf16.gmra.mxu0 %v396
    %v2848 = vpop.f32.mrf.mxu0
    %v2849 = vadd.f32 %v2808, %v2848
    %v2850 = vpop.f32.mrf.mxu0
    %v2851 = vadd.f32 %v2810, %v2850
    %v2852 = vpop.f32.mrf.mxu0
    %v2853 = vpop.f32.mrf.mxu0
    %2854 = vdwg.mxu0
    %2855 = vmatprep.subr.bf16.mxu0 %v2075
    %2856 = vmatpush1.bf16.msra.mxu0 %v2074
    %2857 = vmatprep.subr.bf16.mxu0 %v2073
    %2858 = vmatpush1.bf16.msra.mxu0 %v2072
    %2859 = vmatprep.subr.bf16.mxu0 %v2071
    %2860 = vmatpush1.bf16.msra.mxu0 %v2070
    %2861 = vmatprep.subr.bf16.mxu0 %v2069
    %2862 = vmatpush1.bf16.msra.mxu0 %v2068
    %2863 = vmatprep.subr.bf16.mxu0 %v2067
    %2864 = vmatpush1.bf16.msra.mxu0 %v2066
    %2865 = vmatprep.subr.bf16.mxu0 %v2065
    %2866 = vmatpush1.bf16.msra.mxu0 %v2064
    %2867 = vmatprep.subr.bf16.mxu0 %v2063
    %2868 = vmatpush1.bf16.msra.mxu0 %v2062
    %2869 = vmatprep.subr.bf16.mxu0 %v2061
    %2870 = vmatpush1.bf16.msra.mxu0 %v2060
    %2871 = vmatprep.subr.bf16.mxu0 %v2091
    %2872 = vmatpush2.bf16.msra.mxu0 %v2090
    %2873 = vmatprep.subr.bf16.mxu0 %v2089
    %2874 = vmatpush2.bf16.msra.mxu0 %v2088
    %2875 = vmatprep.subr.bf16.mxu0 %v2087
    %2876 = vmatpush2.bf16.msra.mxu0 %v2086
    %2877 = vmatprep.subr.bf16.mxu0 %v2085
    %2878 = vmatpush2.bf16.msra.mxu0 %v2084
    %2879 = vmatprep.subr.bf16.mxu0 %v2083
    %2880 = vmatpush2.bf16.msra.mxu0 %v2082
    %2881 = vmatprep.subr.bf16.mxu0 %v2081
    %2882 = vmatpush2.bf16.msra.mxu0 %v2080
    %2883 = vmatprep.subr.bf16.mxu0 %v2079
    %2884 = vmatpush2.bf16.msra.mxu0 %v2078
    %2885 = vmatprep.subr.bf16.mxu0 %v2077
    %2886 = vmatpush2.bf16.msra.mxu0 %v2076
    %2887 = vmatprep.mubr.bf16.mxu0 %v399
    %2888 = vmatmul.mubr.bf16.gmra.mxu0 %v398
    %v2889 = vpop.f32.mrf.mxu0
    %v2890 = vadd.f32 %v2849, %v2889
    %v2891 = vpop.f32.mrf.mxu0
    %v2892 = vadd.f32 %v2851, %v2891
    %v2893 = vpop.f32.mrf.mxu0
    %v2894 = vpop.f32.mrf.mxu0
    %2895 = vdwg.mxu0
    %2896 = vmatprep.subr.bf16.mxu0 %v2107
    %2897 = vmatpush1.bf16.msra.mxu0 %v2106
    %2898 = vmatprep.subr.bf16.mxu0 %v2105
    %2899 = vmatpush1.bf16.msra.mxu0 %v2104
    %2900 = vmatprep.subr.bf16.mxu0 %v2103
    %2901 = vmatpush1.bf16.msra.mxu0 %v2102
    %2902 = vmatprep.subr.bf16.mxu0 %v2101
    %2903 = vmatpush1.bf16.msra.mxu0 %v2100
    %2904 = vmatprep.subr.bf16.mxu0 %v2099
    %2905 = vmatpush1.bf16.msra.mxu0 %v2098
    %2906 = vmatprep.subr.bf16.mxu0 %v2097
    %2907 = vmatpush1.bf16.msra.mxu0 %v2096
    %2908 = vmatprep.subr.bf16.mxu0 %v2095
    %2909 = vmatpush1.bf16.msra.mxu0 %v2094
    %2910 = vmatprep.subr.bf16.mxu0 %v2093
    %2911 = vmatpush1.bf16.msra.mxu0 %v2092
    %2912 = vmatprep.subr.bf16.mxu0 %v2123
    %2913 = vmatpush2.bf16.msra.mxu0 %v2122
    %2914 = vmatprep.subr.bf16.mxu0 %v2121
    %2915 = vmatpush2.bf16.msra.mxu0 %v2120
    %2916 = vmatprep.subr.bf16.mxu0 %v2119
    %2917 = vmatpush2.bf16.msra.mxu0 %v2118
    %2918 = vmatprep.subr.bf16.mxu0 %v2117
    %2919 = vmatpush2.bf16.msra.mxu0 %v2116
    %2920 = vmatprep.subr.bf16.mxu0 %v2115
    %2921 = vmatpush2.bf16.msra.mxu0 %v2114
    %2922 = vmatprep.subr.bf16.mxu0 %v2113
    %2923 = vmatpush2.bf16.msra.mxu0 %v2112
    %2924 = vmatprep.subr.bf16.mxu0 %v2111
    %2925 = vmatpush2.bf16.msra.mxu0 %v2110
    %2926 = vmatprep.subr.bf16.mxu0 %v2109
    %2927 = vmatpush2.bf16.msra.mxu0 %v2108
    %2928 = vmatprep.mubr.bf16.mxu0 %v401
    %2929 = vmatmul.mubr.bf16.gmra.mxu0 %v400
    %v2930 = vpop.f32.mrf.mxu0
    %v2931 = vadd.f32 %v2890, %v2930
    %v2932 = vpop.f32.mrf.mxu0
    %v2933 = vadd.f32 %v2892, %v2932
    %v2934 = vpop.f32.mrf.mxu0
    %v2935 = vpop.f32.mrf.mxu0
    %2936 = vdwg.mxu0
    %2937 = vmatprep.subr.bf16.mxu0 %v2139
    %2938 = vmatpush1.bf16.msra.mxu0 %v2138
    %2939 = vmatprep.subr.bf16.mxu0 %v2137
    %2940 = vmatpush1.bf16.msra.mxu0 %v2136
    %2941 = vmatprep.subr.bf16.mxu0 %v2135
    %2942 = vmatpush1.bf16.msra.mxu0 %v2134
    %2943 = vmatprep.subr.bf16.mxu0 %v2133
    %2944 = vmatpush1.bf16.msra.mxu0 %v2132
    %2945 = vmatprep.subr.bf16.mxu0 %v2131
    %2946 = vmatpush1.bf16.msra.mxu0 %v2130
    %2947 = vmatprep.subr.bf16.mxu0 %v2129
    %2948 = vmatpush1.bf16.msra.mxu0 %v2128
    %2949 = vmatprep.subr.bf16.mxu0 %v2127
    %2950 = vmatpush1.bf16.msra.mxu0 %v2126
    %2951 = vmatprep.subr.bf16.mxu0 %v2125
    %2952 = vmatpush1.bf16.msra.mxu0 %v2124
    %2953 = vmatprep.subr.bf16.mxu0 %v2155
    %2954 = vmatpush2.bf16.msra.mxu0 %v2154
    %2955 = vmatprep.subr.bf16.mxu0 %v2153
    %2956 = vmatpush2.bf16.msra.mxu0 %v2152
    %2957 = vmatprep.subr.bf16.mxu0 %v2151
    %2958 = vmatpush2.bf16.msra.mxu0 %v2150
    %2959 = vmatprep.subr.bf16.mxu0 %v2149
    %2960 = vmatpush2.bf16.msra.mxu0 %v2148
    %2961 = vmatprep.subr.bf16.mxu0 %v2147
    %2962 = vmatpush2.bf16.msra.mxu0 %v2146
    %2963 = vmatprep.subr.bf16.mxu0 %v2145
    %2964 = vmatpush2.bf16.msra.mxu0 %v2144
    %2965 = vmatprep.subr.bf16.mxu0 %v2143
    %2966 = vmatpush2.bf16.msra.mxu0 %v2142
    %2967 = vmatprep.subr.bf16.mxu0 %v2141
    %2968 = vmatpush2.bf16.msra.mxu0 %v2140
    %2969 = vmatprep.mubr.bf16.mxu0 %v403
    %2970 = vmatmul.mubr.bf16.gmra.mxu0 %v402
    %v2971 = vpop.f32.mrf.mxu0
    %v2972 = vadd.f32 %v2931, %v2971
    %v2973 = vpop.f32.mrf.mxu0
    %v2974 = vadd.f32 %v2933, %v2973
    %v2975 = vpop.f32.mrf.mxu0
    %v2976 = vpop.f32.mrf.mxu0
    %2977 = vdwg.mxu0
    %2978 = vmatprep.subr.bf16.mxu0 %v2171
    %2979 = vmatpush1.bf16.msra.mxu0 %v2170
    %2980 = vmatprep.subr.bf16.mxu0 %v2169
    %2981 = vmatpush1.bf16.msra.mxu0 %v2168
    %2982 = vmatprep.subr.bf16.mxu0 %v2167
    %2983 = vmatpush1.bf16.msra.mxu0 %v2166
    %2984 = vmatprep.subr.bf16.mxu0 %v2165
    %2985 = vmatpush1.bf16.msra.mxu0 %v2164
    %2986 = vmatprep.subr.bf16.mxu0 %v2163
    %2987 = vmatpush1.bf16.msra.mxu0 %v2162
    %2988 = vmatprep.subr.bf16.mxu0 %v2161
    %2989 = vmatpush1.bf16.msra.mxu0 %v2160
    %2990 = vmatprep.subr.bf16.mxu0 %v2159
    %2991 = vmatpush1.bf16.msra.mxu0 %v2158
    %2992 = vmatprep.subr.bf16.mxu0 %v2157
    %2993 = vmatpush1.bf16.msra.mxu0 %v2156
    %2994 = vmatprep.subr.bf16.mxu0 %v2187
    %2995 = vmatpush2.bf16.msra.mxu0 %v2186
    %2996 = vmatprep.subr.bf16.mxu0 %v2185
    %2997 = vmatpush2.bf16.msra.mxu0 %v2184
    %2998 = vmatprep.subr.bf16.mxu0 %v2183
    %2999 = vmatpush2.bf16.msra.mxu0 %v2182
    %3000 = vmatprep.subr.bf16.mxu0 %v2181
    %3001 = vmatpush2.bf16.msra.mxu0 %v2180
    %3002 = vmatprep.subr.bf16.mxu0 %v2179
    %3003 = vmatpush2.bf16.msra.mxu0 %v2178
    %3004 = vmatprep.subr.bf16.mxu0 %v2177
    %3005 = vmatpush2.bf16.msra.mxu0 %v2176
    %3006 = vmatprep.subr.bf16.mxu0 %v2175
    %3007 = vmatpush2.bf16.msra.mxu0 %v2174
    %3008 = vmatprep.subr.bf16.mxu0 %v2173
    %3009 = vmatpush2.bf16.msra.mxu0 %v2172
    %3010 = vmatprep.mubr.bf16.mxu0 %v405
    %3011 = vmatmul.mubr.bf16.gmra.mxu0 %v404
    %v3012 = vpop.f32.mrf.mxu0
    %v3013 = vadd.f32 %v2972, %v3012
    %v3014 = vpop.f32.mrf.mxu0
    %v3015 = vadd.f32 %v2974, %v3014
    %v3016 = vpop.f32.mrf.mxu0
    %v3017 = vpop.f32.mrf.mxu0
    %3018 = vdwg.mxu0
    %3019 = vmatprep.subr.bf16.mxu0 %v2203
    %3020 = vmatpush1.bf16.msra.mxu0 %v2202
    %3021 = vmatprep.subr.bf16.mxu0 %v2201
    %3022 = vmatpush1.bf16.msra.mxu0 %v2200
    %3023 = vmatprep.subr.bf16.mxu0 %v2199
    %3024 = vmatpush1.bf16.msra.mxu0 %v2198
    %3025 = vmatprep.subr.bf16.mxu0 %v2197
    %3026 = vmatpush1.bf16.msra.mxu0 %v2196
    %3027 = vmatprep.subr.bf16.mxu0 %v2195
    %3028 = vmatpush1.bf16.msra.mxu0 %v2194
    %3029 = vmatprep.subr.bf16.mxu0 %v2193
    %3030 = vmatpush1.bf16.msra.mxu0 %v2192
    %3031 = vmatprep.subr.bf16.mxu0 %v2191
    %3032 = vmatpush1.bf16.msra.mxu0 %v2190
    %3033 = vmatprep.subr.bf16.mxu0 %v2189
    %3034 = vmatpush1.bf16.msra.mxu0 %v2188
    %3035 = vmatprep.subr.bf16.mxu0 %v2219
    %3036 = vmatpush2.bf16.msra.mxu0 %v2218
    %3037 = vmatprep.subr.bf16.mxu0 %v2217
    %3038 = vmatpush2.bf16.msra.mxu0 %v2216
    %3039 = vmatprep.subr.bf16.mxu0 %v2215
    %3040 = vmatpush2.bf16.msra.mxu0 %v2214
    %3041 = vmatprep.subr.bf16.mxu0 %v2213
    %3042 = vmatpush2.bf16.msra.mxu0 %v2212
    %3043 = vmatprep.subr.bf16.mxu0 %v2211
    %3044 = vmatpush2.bf16.msra.mxu0 %v2210
    %3045 = vmatprep.subr.bf16.mxu0 %v2209
    %3046 = vmatpush2.bf16.msra.mxu0 %v2208
    %3047 = vmatprep.subr.bf16.mxu0 %v2207
    %3048 = vmatpush2.bf16.msra.mxu0 %v2206
    %3049 = vmatprep.subr.bf16.mxu0 %v2205
    %3050 = vmatpush2.bf16.msra.mxu0 %v2204
    %3051 = vmatprep.mubr.bf16.mxu0 %v407
    %3052 = vmatmul.mubr.bf16.gmra.mxu0 %v406
    %v3053 = vpop.f32.mrf.mxu0
    %v3054 = vadd.f32 %v3013, %v3053
    %v3055 = vpop.f32.mrf.mxu0
    %v3056 = vadd.f32 %v3015, %v3055
    %v3057 = vpop.f32.mrf.mxu0
    %v3058 = vpop.f32.mrf.mxu0
    %3059 = vdwg.mxu0
    %3060 = vmatprep.subr.bf16.mxu0 %v2235
    %3061 = vmatpush1.bf16.msra.mxu0 %v2234
    %3062 = vmatprep.subr.bf16.mxu0 %v2233
    %3063 = vmatpush1.bf16.msra.mxu0 %v2232
    %3064 = vmatprep.subr.bf16.mxu0 %v2231
    %3065 = vmatpush1.bf16.msra.mxu0 %v2230
    %3066 = vmatprep.subr.bf16.mxu0 %v2229
    %3067 = vmatpush1.bf16.msra.mxu0 %v2228
    %3068 = vmatprep.subr.bf16.mxu0 %v2227
    %3069 = vmatpush1.bf16.msra.mxu0 %v2226
    %3070 = vmatprep.subr.bf16.mxu0 %v2225
    %3071 = vmatpush1.bf16.msra.mxu0 %v2224
    %3072 = vmatprep.subr.bf16.mxu0 %v2223
    %3073 = vmatpush1.bf16.msra.mxu0 %v2222
    %3074 = vmatprep.subr.bf16.mxu0 %v2221
    %3075 = vmatpush1.bf16.msra.mxu0 %v2220
    %3076 = vmatprep.subr.bf16.mxu0 %v2251
    %3077 = vmatpush2.bf16.msra.mxu0 %v2250
    %3078 = vmatprep.subr.bf16.mxu0 %v2249
    %3079 = vmatpush2.bf16.msra.mxu0 %v2248
    %3080 = vmatprep.subr.bf16.mxu0 %v2247
    %3081 = vmatpush2.bf16.msra.mxu0 %v2246
    %3082 = vmatprep.subr.bf16.mxu0 %v2245
    %3083 = vmatpush2.bf16.msra.mxu0 %v2244
    %3084 = vmatprep.subr.bf16.mxu0 %v2243
    %3085 = vmatpush2.bf16.msra.mxu0 %v2242
    %3086 = vmatprep.subr.bf16.mxu0 %v2241
    %3087 = vmatpush2.bf16.msra.mxu0 %v2240
    %3088 = vmatprep.subr.bf16.mxu0 %v2239
    %3089 = vmatpush2.bf16.msra.mxu0 %v2238
    %3090 = vmatprep.subr.bf16.mxu0 %v2237
    %3091 = vmatpush2.bf16.msra.mxu0 %v2236
    %3092 = vmatprep.mubr.bf16.mxu0 %v409
    %3093 = vmatmul.mubr.bf16.gmra.mxu0 %v408
    %v3094 = vpop.f32.mrf.mxu0
    %v3095 = vadd.f32 %v3054, %v3094
    %v3096 = vpop.f32.mrf.mxu0
    %v3097 = vadd.f32 %v3056, %v3096
    %v3098 = vpop.f32.mrf.mxu0
    %v3099 = vpop.f32.mrf.mxu0
    %3100 = vdwg.mxu0
    %3101 = vmatprep.subr.bf16.mxu0 %v2267
    %3102 = vmatpush1.bf16.msra.mxu0 %v2266
    %3103 = vmatprep.subr.bf16.mxu0 %v2265
    %3104 = vmatpush1.bf16.msra.mxu0 %v2264
    %3105 = vmatprep.subr.bf16.mxu0 %v2263
    %3106 = vmatpush1.bf16.msra.mxu0 %v2262
    %3107 = vmatprep.subr.bf16.mxu0 %v2261
    %3108 = vmatpush1.bf16.msra.mxu0 %v2260
    %3109 = vmatprep.subr.bf16.mxu0 %v2259
    %3110 = vmatpush1.bf16.msra.mxu0 %v2258
    %3111 = vmatprep.subr.bf16.mxu0 %v2257
    %3112 = vmatpush1.bf16.msra.mxu0 %v2256
    %3113 = vmatprep.subr.bf16.mxu0 %v2255
    %3114 = vmatpush1.bf16.msra.mxu0 %v2254
    %3115 = vmatprep.subr.bf16.mxu0 %v2253
    %3116 = vmatpush1.bf16.msra.mxu0 %v2252
    %3117 = vmatprep.subr.bf16.mxu0 %v2283
    %3118 = vmatpush2.bf16.msra.mxu0 %v2282
    %3119 = vmatprep.subr.bf16.mxu0 %v2281
    %3120 = vmatpush2.bf16.msra.mxu0 %v2280
    %3121 = vmatprep.subr.bf16.mxu0 %v2279
    %3122 = vmatpush2.bf16.msra.mxu0 %v2278
    %3123 = vmatprep.subr.bf16.mxu0 %v2277
    %3124 = vmatpush2.bf16.msra.mxu0 %v2276
    %3125 = vmatprep.subr.bf16.mxu0 %v2275
    %3126 = vmatpush2.bf16.msra.mxu0 %v2274
    %3127 = vmatprep.subr.bf16.mxu0 %v2273
    %3128 = vmatpush2.bf16.msra.mxu0 %v2272
    %3129 = vmatprep.subr.bf16.mxu0 %v2271
    %3130 = vmatpush2.bf16.msra.mxu0 %v2270
    %3131 = vmatprep.subr.bf16.mxu0 %v2269
    %3132 = vmatpush2.bf16.msra.mxu0 %v2268
    %3133 = vmatprep.mubr.bf16.mxu0 %v411
    %3134 = vmatmul.mubr.bf16.gmra.mxu0 %v410
    %v3135 = vpop.f32.mrf.mxu0
    %v3136 = vadd.f32 %v3095, %v3135
    %v3137 = vpop.f32.mrf.mxu0
    %v3138 = vadd.f32 %v3097, %v3137
    %v3139 = vpop.f32.mrf.mxu0
    %v3140 = vpop.f32.mrf.mxu0
    %3141 = vdwg.mxu0
    %3142 = vmatprep.subr.bf16.mxu0 %v2299
    %3143 = vmatpush1.bf16.msra.mxu0 %v2298
    %3144 = vmatprep.subr.bf16.mxu0 %v2297
    %3145 = vmatpush1.bf16.msra.mxu0 %v2296
    %3146 = vmatprep.subr.bf16.mxu0 %v2295
    %3147 = vmatpush1.bf16.msra.mxu0 %v2294
    %3148 = vmatprep.subr.bf16.mxu0 %v2293
    %3149 = vmatpush1.bf16.msra.mxu0 %v2292
    %3150 = vmatprep.subr.bf16.mxu0 %v2291
    %3151 = vmatpush1.bf16.msra.mxu0 %v2290
    %3152 = vmatprep.subr.bf16.mxu0 %v2289
    %3153 = vmatpush1.bf16.msra.mxu0 %v2288
    %3154 = vmatprep.subr.bf16.mxu0 %v2287
    %3155 = vmatpush1.bf16.msra.mxu0 %v2286
    %3156 = vmatprep.subr.bf16.mxu0 %v2285
    %3157 = vmatpush1.bf16.msra.mxu0 %v2284
    %3158 = vmatprep.subr.bf16.mxu0 %v2315
    %3159 = vmatpush2.bf16.msra.mxu0 %v2314
    %3160 = vmatprep.subr.bf16.mxu0 %v2313
    %3161 = vmatpush2.bf16.msra.mxu0 %v2312
    %3162 = vmatprep.subr.bf16.mxu0 %v2311
    %3163 = vmatpush2.bf16.msra.mxu0 %v2310
    %3164 = vmatprep.subr.bf16.mxu0 %v2309
    %3165 = vmatpush2.bf16.msra.mxu0 %v2308
    %3166 = vmatprep.subr.bf16.mxu0 %v2307
    %3167 = vmatpush2.bf16.msra.mxu0 %v2306
    %3168 = vmatprep.subr.bf16.mxu0 %v2305
    %3169 = vmatpush2.bf16.msra.mxu0 %v2304
    %3170 = vmatprep.subr.bf16.mxu0 %v2303
    %3171 = vmatpush2.bf16.msra.mxu0 %v2302
    %3172 = vmatprep.subr.bf16.mxu0 %v2301
    %3173 = vmatpush2.bf16.msra.mxu0 %v2300
    %3174 = vmatprep.mubr.bf16.mxu0 %v413
    %3175 = vmatmul.mubr.bf16.gmra.mxu0 %v412
    %v3176 = vpop.f32.mrf.mxu0
    %v3177 = vadd.f32 %v3136, %v3176
    %v3178 = vpop.f32.mrf.mxu0
    %v3179 = vadd.f32 %v3138, %v3178
    %v3180 = vpop.f32.mrf.mxu0
    %v3181 = vpop.f32.mrf.mxu0
    %3182 = vdwg.mxu0
    %3183 = vmatprep.subr.bf16.mxu0 %v2331
    %3184 = vmatpush1.bf16.msra.mxu0 %v2330
    %3185 = vmatprep.subr.bf16.mxu0 %v2329
    %3186 = vmatpush1.bf16.msra.mxu0 %v2328
    %3187 = vmatprep.subr.bf16.mxu0 %v2327
    %3188 = vmatpush1.bf16.msra.mxu0 %v2326
    %3189 = vmatprep.subr.bf16.mxu0 %v2325
    %3190 = vmatpush1.bf16.msra.mxu0 %v2324
    %3191 = vmatprep.subr.bf16.mxu0 %v2323
    %3192 = vmatpush1.bf16.msra.mxu0 %v2322
    %3193 = vmatprep.subr.bf16.mxu0 %v2321
    %3194 = vmatpush1.bf16.msra.mxu0 %v2320
    %3195 = vmatprep.subr.bf16.mxu0 %v2319
    %3196 = vmatpush1.bf16.msra.mxu0 %v2318
    %3197 = vmatprep.subr.bf16.mxu0 %v2317
    %3198 = vmatpush1.bf16.msra.mxu0 %v2316
    %3199 = vmatprep.subr.bf16.mxu0 %v2347
    %3200 = vmatpush2.bf16.msra.mxu0 %v2346
    %3201 = vmatprep.subr.bf16.mxu0 %v2345
    %3202 = vmatpush2.bf16.msra.mxu0 %v2344
    %3203 = vmatprep.subr.bf16.mxu0 %v2343
    %3204 = vmatpush2.bf16.msra.mxu0 %v2342
    %3205 = vmatprep.subr.bf16.mxu0 %v2341
    %3206 = vmatpush2.bf16.msra.mxu0 %v2340
    %3207 = vmatprep.subr.bf16.mxu0 %v2339
    %3208 = vmatpush2.bf16.msra.mxu0 %v2338
    %3209 = vmatprep.subr.bf16.mxu0 %v2337
    %3210 = vmatpush2.bf16.msra.mxu0 %v2336
    %3211 = vmatprep.subr.bf16.mxu0 %v2335
    %3212 = vmatpush2.bf16.msra.mxu0 %v2334
    %3213 = vmatprep.subr.bf16.mxu0 %v2333
    %3214 = vmatpush2.bf16.msra.mxu0 %v2332
    %3215 = vmatprep.mubr.bf16.mxu0 %v415
    %3216 = vmatmul.mubr.bf16.gmra.mxu0 %v414
    %v3217 = vpop.f32.mrf.mxu0
    %v3218 = vadd.f32 %v3177, %v3217
    %v3219 = vpop.f32.mrf.mxu0
    %v3220 = vadd.f32 %v3179, %v3219
    %v3221 = vpop.f32.mrf.mxu0
    %v3222 = vpop.f32.mrf.mxu0
    %3223 = vdwg.mxu0
    %v3224 = vmax.f32 %v3218, 0.0
    %v3225 = vmax.f32 %v3220, 0.0
    %v3226 = vpack.c.bf16 %v3224, %v3224
    %v3227 = vpack.c.bf16 %v3225, %v3225
    %v3228 = vld [vmem:[#allocation7] sm:$0xff]
    %v3229 = vld [vmem:[#allocation7 + $0x8] sm:$0xff]
    %v3230 = vld [vmem:[#allocation7 + $0x10] sm:$0xff]
    %v3231 = vld [vmem:[#allocation7 + $0x18] sm:$0xff]
    %v3232 = vld [vmem:[#allocation7 + $0x20] sm:$0xff]
    %v3233 = vld [vmem:[#allocation7 + $0x28] sm:$0xff]
    %v3234 = vld [vmem:[#allocation7 + $0x30] sm:$0xff]
    %v3235 = vld [vmem:[#allocation7 + $0x38] sm:$0xff]
    %v3236 = vld [vmem:[#allocation7 + $0x40] sm:$0xff]
    %v3237 = vld [vmem:[#allocation7 + $0x48] sm:$0xff]
    %v3238 = vld [vmem:[#allocation7 + $0x50] sm:$0xff]
    %v3239 = vld [vmem:[#allocation7 + $0x58] sm:$0xff]
    %v3240 = vld [vmem:[#allocation7 + $0x60] sm:$0xff]
    %v3241 = vld [vmem:[#allocation7 + $0x68] sm:$0xff]
    %v3242 = vld [vmem:[#allocation7 + $0x70] sm:$0xff]
    %v3243 = vld [vmem:[#allocation7 + $0x78] sm:$0xff]
    %v3244 = vld [vmem:[#allocation7 + $0x80] sm:$0xff]
    %v3245 = vld [vmem:[#allocation7 + $0x88] sm:$0xff]
    %v3246 = vld [vmem:[#allocation7 + $0x90] sm:$0xff]
    %v3247 = vld [vmem:[#allocation7 + $0x98] sm:$0xff]
    %v3248 = vld [vmem:[#allocation7 + $0xa0] sm:$0xff]
    %v3249 = vld [vmem:[#allocation7 + $0xa8] sm:$0xff]
    %v3250 = vld [vmem:[#allocation7 + $0xb0] sm:$0xff]
    %v3251 = vld [vmem:[#allocation7 + $0xb8] sm:$0xff]
    %v3252 = vld [vmem:[#allocation7 + $0xc0] sm:$0xff]
    %v3253 = vld [vmem:[#allocation7 + $0xc8] sm:$0xff]
    %v3254 = vld [vmem:[#allocation7 + $0xd0] sm:$0xff]
    %v3255 = vld [vmem:[#allocation7 + $0xd8] sm:$0xff]
    %v3256 = vld [vmem:[#allocation7 + $0xe0] sm:$0xff]
    %v3257 = vld [vmem:[#allocation7 + $0xe8] sm:$0xff]
    %v3258 = vld [vmem:[#allocation7 + $0xf0] sm:$0xff]
    %v3259 = vld [vmem:[#allocation7 + $0xf8] sm:$0xff]
    %v3260 = vld [vmem:[#allocation8] sm:$0x3]
    %v3262 = vlaneseq
    %v3263 = vshrl.u32 %v3262, 7
    %v3264 = vsub.s32 0, %v3263
    %v3265 = vrot.slane %v3260, %v3264
    %v3266 = vlaneseq
    %v3267 = vshrl.u32 %v3266, 7
    %v3268 = vsub.s32 1, %v3267
    %v3269 = vrot.slane %v3260, %v3268
    %v3304 = vunpack.c.l.b16 %v3228
    %v3305 = vunpack.c.h.b16 %v3228
    %v3306 = vunpack.c.l.b16 %v3229
    %v3307 = vunpack.c.h.b16 %v3229
    %v3308 = vunpack.c.l.b16 %v3230
    %v3309 = vunpack.c.h.b16 %v3230
    %v3310 = vunpack.c.l.b16 %v3231
    %v3311 = vunpack.c.h.b16 %v3231
    %v3312 = vunpack.c.l.b16 %v3232
    %v3313 = vunpack.c.h.b16 %v3232
    %v3314 = vunpack.c.l.b16 %v3233
    %v3315 = vunpack.c.h.b16 %v3233
    %v3316 = vunpack.c.l.b16 %v3234
    %v3317 = vunpack.c.h.b16 %v3234
    %v3318 = vunpack.c.l.b16 %v3235
    %v3319 = vunpack.c.h.b16 %v3235
    %v3320 = vunpack.c.l.b16 %v3236
    %v3321 = vunpack.c.h.b16 %v3236
    %v3322 = vunpack.c.l.b16 %v3237
    %v3323 = vunpack.c.h.b16 %v3237
    %v3324 = vunpack.c.l.b16 %v3238
    %v3325 = vunpack.c.h.b16 %v3238
    %v3326 = vunpack.c.l.b16 %v3239
    %v3327 = vunpack.c.h.b16 %v3239
    %v3328 = vunpack.c.l.b16 %v3240
    %v3329 = vunpack.c.h.b16 %v3240
    %v3330 = vunpack.c.l.b16 %v3241
    %v3331 = vunpack.c.h.b16 %v3241
    %v3332 = vunpack.c.l.b16 %v3242
    %v3333 = vunpack.c.h.b16 %v3242
    %v3334 = vunpack.c.l.b16 %v3243
    %v3335 = vunpack.c.h.b16 %v3243
    %v3336 = vunpack.c.l.b16 %v3244
    %v3337 = vunpack.c.h.b16 %v3244
    %v3338 = vunpack.c.l.b16 %v3245
    %v3339 = vunpack.c.h.b16 %v3245
    %v3340 = vunpack.c.l.b16 %v3246
    %v3341 = vunpack.c.h.b16 %v3246
    %v3342 = vunpack.c.l.b16 %v3247
    %v3343 = vunpack.c.h.b16 %v3247
    %v3344 = vunpack.c.l.b16 %v3248
    %v3345 = vunpack.c.h.b16 %v3248
    %v3346 = vunpack.c.l.b16 %v3249
    %v3347 = vunpack.c.h.b16 %v3249
    %v3348 = vunpack.c.l.b16 %v3250
    %v3349 = vunpack.c.h.b16 %v3250
    %v3350 = vunpack.c.l.b16 %v3251
    %v3351 = vunpack.c.h.b16 %v3251
    %v3352 = vunpack.c.l.b16 %v3252
    %v3353 = vunpack.c.h.b16 %v3252
    %v3354 = vunpack.c.l.b16 %v3253
    %v3355 = vunpack.c.h.b16 %v3253
    %v3356 = vunpack.c.l.b16 %v3254
    %v3357 = vunpack.c.h.b16 %v3254
    %v3358 = vunpack.c.l.b16 %v3255
    %v3359 = vunpack.c.h.b16 %v3255
    %v3360 = vunpack.c.l.b16 %v3256
    %v3361 = vunpack.c.h.b16 %v3256
    %v3362 = vunpack.c.l.b16 %v3257
    %v3363 = vunpack.c.h.b16 %v3257
    %v3364 = vunpack.c.l.b16 %v3258
    %v3365 = vunpack.c.h.b16 %v3258
    %v3366 = vunpack.c.l.b16 %v3259
    %v3367 = vunpack.c.h.b16 %v3259
    %v3368 = vpack.c.b16 %v3306, %v3304
    %v3369 = vpack.c.b16 %v3307, %v3305
    %v3370 = vpack.c.b16 %v3310, %v3308
    %v3371 = vpack.c.b16 %v3311, %v3309
    %v3372 = vpack.c.b16 %v3314, %v3312
    %v3373 = vpack.c.b16 %v3315, %v3313
    %v3374 = vpack.c.b16 %v3318, %v3316
    %v3375 = vpack.c.b16 %v3319, %v3317
    %v3376 = vpack.c.b16 %v3322, %v3320
    %v3377 = vpack.c.b16 %v3323, %v3321
    %v3378 = vpack.c.b16 %v3326, %v3324
    %v3379 = vpack.c.b16 %v3327, %v3325
    %v3380 = vpack.c.b16 %v3330, %v3328
    %v3381 = vpack.c.b16 %v3331, %v3329
    %v3382 = vpack.c.b16 %v3334, %v3332
    %v3383 = vpack.c.b16 %v3335, %v3333
    %v3384 = vpack.c.b16 %v3338, %v3336
    %v3385 = vpack.c.b16 %v3339, %v3337
    %v3386 = vpack.c.b16 %v3342, %v3340
    %v3387 = vpack.c.b16 %v3343, %v3341
    %v3388 = vpack.c.b16 %v3346, %v3344
    %v3389 = vpack.c.b16 %v3347, %v3345
    %v3390 = vpack.c.b16 %v3350, %v3348
    %v3391 = vpack.c.b16 %v3351, %v3349
    %v3392 = vpack.c.b16 %v3354, %v3352
    %v3393 = vpack.c.b16 %v3355, %v3353
    %v3394 = vpack.c.b16 %v3358, %v3356
    %v3395 = vpack.c.b16 %v3359, %v3357
    %v3396 = vpack.c.b16 %v3362, %v3360
    %v3397 = vpack.c.b16 %v3363, %v3361
    %v3398 = vpack.c.b16 %v3366, %v3364
    %v3399 = vpack.c.b16 %v3367, %v3365
    %3432 = vmatprep.subr.bf16.mxu0 %v3383
    %3433 = vmatpush1.bf16.msra.mxu0 %v3382
    %3434 = vmatprep.subr.bf16.mxu0 %v3381
    %3435 = vmatpush1.bf16.msra.mxu0 %v3380
    %3436 = vmatprep.subr.bf16.mxu0 %v3379
    %3437 = vmatpush1.bf16.msra.mxu0 %v3378
    %3438 = vmatprep.subr.bf16.mxu0 %v3377
    %3439 = vmatpush1.bf16.msra.mxu0 %v3376
    %3440 = vmatprep.subr.bf16.mxu0 %v3375
    %3441 = vmatpush1.bf16.msra.mxu0 %v3374
    %3442 = vmatprep.subr.bf16.mxu0 %v3373
    %3443 = vmatpush1.bf16.msra.mxu0 %v3372
    %3444 = vmatprep.subr.bf16.mxu0 %v3371
    %3445 = vmatpush1.bf16.msra.mxu0 %v3370
    %3446 = vmatprep.subr.bf16.mxu0 %v3369
    %3447 = vmatpush1.bf16.msra.mxu0 %v3368
    %3448 = vmatprep.subr.bf16.mxu0 %v3399
    %3449 = vmatpush2.bf16.msra.mxu0 %v3398
    %3450 = vmatprep.subr.bf16.mxu0 %v3397
    %3451 = vmatpush2.bf16.msra.mxu0 %v3396
    %3452 = vmatprep.subr.bf16.mxu0 %v3395
    %3453 = vmatpush2.bf16.msra.mxu0 %v3394
    %3454 = vmatprep.subr.bf16.mxu0 %v3393
    %3455 = vmatpush2.bf16.msra.mxu0 %v3392
    %3456 = vmatprep.subr.bf16.mxu0 %v3391
    %3457 = vmatpush2.bf16.msra.mxu0 %v3390
    %3458 = vmatprep.subr.bf16.mxu0 %v3389
    %3459 = vmatpush2.bf16.msra.mxu0 %v3388
    %3460 = vmatprep.subr.bf16.mxu0 %v3387
    %3461 = vmatpush2.bf16.msra.mxu0 %v3386
    %3462 = vmatprep.subr.bf16.mxu0 %v3385
    %3463 = vmatpush2.bf16.msra.mxu0 %v3384
    %3464 = vmatprep.mubr.bf16.mxu0 %v3227
    %3465 = vmatmul.mubr.bf16.gmra.mxu0 %v3226
    %v3466 = vpop.f32.mrf.mxu0
    %v3467 = vadd.f32 %v3265, %v3466
    %v3468 = vpop.f32.mrf.mxu0
    %v3469 = vadd.f32 %v3269, %v3468
    %v3470 = vpop.f32.mrf.mxu0
    %v3471 = vpop.f32.mrf.mxu0
    %3472 = vdwg.mxu0
    %v3473 = vmax.f32 %v3467, 0.0
    %v3474 = vmax.f32 %v3469, 0.0
    %v3475 = vpack.c.bf16 %v3473, %v3473
    %v3476 = vpack.c.bf16 %v3474, %v3474
    %v3477 = vld [vmem:[#allocation10] sm:$0xf]
    %v3478 = vld [vmem:[#allocation10 + $0x4] sm:$0xf]
    %v3479 = vld [vmem:[#allocation10 + $0x8] sm:$0xf]
    %v3480 = vld [vmem:[#allocation10 + $0xc] sm:$0xf]
    %v3481 = vld [vmem:[#allocation10 + $0x10] sm:$0xf]
    %v3482 = vld [vmem:[#allocation10 + $0x14] sm:$0xf]
    %v3483 = vld [vmem:[#allocation10 + $0x18] sm:$0xf]
    %v3484 = vld [vmem:[#allocation10 + $0x1c] sm:$0xf]
    %v3485 = vld [vmem:[#allocation10 + $0x20] sm:$0xf]
    %v3486 = vld [vmem:[#allocation10 + $0x24] sm:$0xf]
    %v3487 = vld [vmem:[#allocation10 + $0x28] sm:$0xf]
    %v3488 = vld [vmem:[#allocation10 + $0x2c] sm:$0xf]
    %v3489 = vld [vmem:[#allocation10 + $0x30] sm:$0xf]
    %v3490 = vld [vmem:[#allocation10 + $0x34] sm:$0xf]
    %v3491 = vld [vmem:[#allocation10 + $0x38] sm:$0xf]
    %v3492 = vld [vmem:[#allocation10 + $0x3c] sm:$0xf]
    %v3493 = vld [vmem:[#allocation10 + $0x40] sm:$0xf]
    %v3494 = vld [vmem:[#allocation10 + $0x44] sm:$0xf]
    %v3495 = vld [vmem:[#allocation10 + $0x48] sm:$0xf]
    %v3496 = vld [vmem:[#allocation10 + $0x4c] sm:$0xf]
    %v3497 = vld [vmem:[#allocation10 + $0x50] sm:$0xf]
    %v3498 = vld [vmem:[#allocation10 + $0x54] sm:$0xf]
    %v3499 = vld [vmem:[#allocation10 + $0x58] sm:$0xf]
    %v3500 = vld [vmem:[#allocation10 + $0x5c] sm:$0xf]
    %v3501 = vld [vmem:[#allocation10 + $0x60] sm:$0xf]
    %v3502 = vld [vmem:[#allocation10 + $0x64] sm:$0xf]
    %v3503 = vld [vmem:[#allocation10 + $0x68] sm:$0xf]
    %v3504 = vld [vmem:[#allocation10 + $0x6c] sm:$0xf]
    %v3505 = vld [vmem:[#allocation10 + $0x70] sm:$0xf]
    %v3506 = vld [vmem:[#allocation10 + $0x74] sm:$0xf]
    %v3507 = vld [vmem:[#allocation10 + $0x78] sm:$0xf]
    %v3508 = vld [vmem:[#allocation10 + $0x7c] sm:$0xf]
    %v3509 = vld [vmem:[#allocation11] sm:$0x1]
    %v3511 = vlaneseq
    %v3512 = vshrl.u32 %v3511, 7
    %v3513 = vsub.s32 0, %v3512
    %v3514 = vrot.slane %v3509, %v3513
    %v3548 = vunpack.c.l.b16 %v3477
    %v3549 = vunpack.c.l.b16 %v3478
    %v3550 = vunpack.c.l.b16 %v3479
    %v3551 = vunpack.c.l.b16 %v3480
    %v3552 = vunpack.c.l.b16 %v3481
    %v3553 = vunpack.c.l.b16 %v3482
    %v3554 = vunpack.c.l.b16 %v3483
    %v3555 = vunpack.c.l.b16 %v3484
    %v3556 = vunpack.c.l.b16 %v3485
    %v3557 = vunpack.c.l.b16 %v3486
    %v3558 = vunpack.c.l.b16 %v3487
    %v3559 = vunpack.c.l.b16 %v3488
    %v3560 = vunpack.c.l.b16 %v3489
    %v3561 = vunpack.c.l.b16 %v3490
    %v3562 = vunpack.c.l.b16 %v3491
    %v3563 = vunpack.c.l.b16 %v3492
    %v3564 = vunpack.c.l.b16 %v3493
    %v3565 = vunpack.c.l.b16 %v3494
    %v3566 = vunpack.c.l.b16 %v3495
    %v3567 = vunpack.c.l.b16 %v3496
    %v3568 = vunpack.c.l.b16 %v3497
    %v3569 = vunpack.c.l.b16 %v3498
    %v3570 = vunpack.c.l.b16 %v3499
    %v3571 = vunpack.c.l.b16 %v3500
    %v3572 = vunpack.c.l.b16 %v3501
    %v3573 = vunpack.c.l.b16 %v3502
    %v3574 = vunpack.c.l.b16 %v3503
    %v3575 = vunpack.c.l.b16 %v3504
    %v3576 = vunpack.c.l.b16 %v3505
    %v3577 = vunpack.c.l.b16 %v3506
    %v3578 = vunpack.c.l.b16 %v3507
    %v3579 = vunpack.c.l.b16 %v3508
    %v3580 = vpack.c.b16 %v3549, %v3548
    %v3581 = vpack.c.b16 %v3551, %v3550
    %v3582 = vpack.c.b16 %v3553, %v3552
    %v3583 = vpack.c.b16 %v3555, %v3554
    %v3584 = vpack.c.b16 %v3557, %v3556
    %v3585 = vpack.c.b16 %v3559, %v3558
    %v3586 = vpack.c.b16 %v3561, %v3560
    %v3587 = vpack.c.b16 %v3563, %v3562
    %v3588 = vpack.c.b16 %v3565, %v3564
    %v3589 = vpack.c.b16 %v3567, %v3566
    %v3590 = vpack.c.b16 %v3569, %v3568
    %v3591 = vpack.c.b16 %v3571, %v3570
    %v3592 = vpack.c.b16 %v3573, %v3572
    %v3593 = vpack.c.b16 %v3575, %v3574
    %v3594 = vpack.c.b16 %v3577, %v3576
    %v3595 = vpack.c.b16 %v3579, %v3578
    %3612 = vmatprep.subr.bf16.mxu0 0
    %3613 = vmatpush1.bf16.msra.mxu0 %v3587
    %3614 = vmatprep.subr.bf16.mxu0 0
    %3615 = vmatpush1.bf16.msra.mxu0 %v3586
    %3616 = vmatprep.subr.bf16.mxu0 0
    %3617 = vmatpush1.bf16.msra.mxu0 %v3585
    %3618 = vmatprep.subr.bf16.mxu0 0
    %3619 = vmatpush1.bf16.msra.mxu0 %v3584
    %3620 = vmatprep.subr.bf16.mxu0 0
    %3621 = vmatpush1.bf16.msra.mxu0 %v3583
    %3622 = vmatprep.subr.bf16.mxu0 0
    %3623 = vmatpush1.bf16.msra.mxu0 %v3582
    %3624 = vmatprep.subr.bf16.mxu0 0
    %3625 = vmatpush1.bf16.msra.mxu0 %v3581
    %3626 = vmatprep.subr.bf16.mxu0 0
    %3627 = vmatpush1.bf16.msra.mxu0 %v3580
    %3628 = vmatprep.subr.bf16.mxu0 0
    %3629 = vmatpush2.bf16.msra.mxu0 %v3595
    %3630 = vmatprep.subr.bf16.mxu0 0
    %3631 = vmatpush2.bf16.msra.mxu0 %v3594
    %3632 = vmatprep.subr.bf16.mxu0 0
    %3633 = vmatpush2.bf16.msra.mxu0 %v3593
    %3634 = vmatprep.subr.bf16.mxu0 0
    %3635 = vmatpush2.bf16.msra.mxu0 %v3592
    %3636 = vmatprep.subr.bf16.mxu0 0
    %3637 = vmatpush2.bf16.msra.mxu0 %v3591
    %3638 = vmatprep.subr.bf16.mxu0 0
    %3639 = vmatpush2.bf16.msra.mxu0 %v3590
    %3640 = vmatprep.subr.bf16.mxu0 0
    %3641 = vmatpush2.bf16.msra.mxu0 %v3589
    %3642 = vmatprep.subr.bf16.mxu0 0
    %3643 = vmatpush2.bf16.msra.mxu0 %v3588
    %3644 = vmatprep.mubr.bf16.mxu0 %v3476
    %3645 = vmatmul.mubr.bf16.gmra.mxu0 %v3475
    %v3646 = vpop.f32.mrf.mxu0
    %v3647 = vadd.f32 %v3514, %v3646
    %v3648 = vpop.f32.mrf.mxu0
    %v3649 = vpop.f32.mrf.mxu0
    %v3650 = vpop.f32.mrf.mxu0
    %3651 = vdwg.mxu0
    %3652 = vst [vmem:[#allocation13] sm:$0xff] %v3647
    // Predicated region
    $region54: #{basic_forward.1} parent=1 // pred_check
      _
    $region55: #{basic_forward.1} parent=1 // pred_check_branch
      %3654 = sbr.rel (0) target = $region57
    $region56: #{basic_forward.1} parent=1 // pred_region
      %s3656 = ssub.s32 128, 32
      %3657 = vsyncadd [#allocation4], %s3656
      %s3658 = sshll.u32 [#allocation13], 4
      %s3659 = int_to_ptr.vmem [resolvable:$true] %s3658
      %3664 = dma.vmem_to_hbm [thread:$0]  %s3659, 32, %s7, [#allocation4], 32, 32, 2
    $region57: #{basic_forward.1} parent=1 // pred_fallthru
      _
    // Predicated region
    $region58: #{basic_forward.1} parent=1 // pred_check
      _
    $region59: #{basic_forward.1} parent=1 // pred_check_branch
      %3666 = sbr.rel (0) target = $region61
    $region60: #{basic_forward.1} parent=1 // pred_region
      %3667 = dma.done [#allocation4], 128
    $region61: #{basic_forward.1} parent=1 // pred_fallthru
      _
    %3668 = vsyncpa [#allocation3], 1
    %3669 = vsyncpa [#allocation6], 1
    %3670 = vsyncpa [#allocation9], 1
    %3671 = vsyncpa [#allocation12], 1
    %3672 = vsyncpa [#allocation4], 1

</llo_original>
